<compile_context>
chip_gen: v7x
topology: tpu7x:2x2x1
jax: 0.10.0
libtpu: 0.0.40
codegen_flags: <defaults>
</compile_context>

<pallas_src>
import math
import numpy as np
import jax
import jax.numpy as jnp
from jax.experimental import pallas as pl
from jax.experimental.pallas import tpu as pltpu

MATMUL_DTYPE = jnp.bfloat16            # MXU operand dtype; accumulation stays f32
_VMEM_LIMIT = 32 * 1024 * 1024         # explicit scoped-VMEM budget (v7x-safe)


# ----------------------------------------------------------------------------
# small helpers
# ----------------------------------------------------------------------------
def _round_up(x, m):
    return (x + m - 1) // m * m


def _lcm(a, b):
    return a * b // math.gcd(a, b)


def _pick_spatial_tile(s1, w, max_lanes=4096):
    """Lane tile that is a multiple of both W (whole output rows) and 128."""
    base = _lcm(w, 128)
    cap = base * max(1, max_lanes // base)
    return min(_round_up(s1, base), cap)


def _interp_matrix_np(out_size, in_size):
    """1-D linear interpolation matrix, align_corners=True (numpy, host-side)."""
    if out_size == in_size:
        return np.eye(out_size, dtype=np.float32)
    coords = np.arange(out_size, dtype=np.float64) * (in_size - 1) / (out_size - 1)
    lo = np.clip(np.floor(coords).astype(np.int64), 0, in_size - 1)
    hi = np.clip(lo + 1, 0, in_size - 1)
    frac = coords - lo
    m = np.zeros((out_size, in_size), dtype=np.float64)
    m[np.arange(out_size), lo] += 1.0 - frac
    m[np.arange(out_size), hi] += frac
    return m.astype(np.float32)


# ----------------------------------------------------------------------------
# Kernel 1: first attention (Wg1 3x3 conv via in-kernel taps + Wx1 1x1 conv +
#           psi1 + sigmoid + multiply), channels-major (C, H*W) layout.
# ----------------------------------------------------------------------------
def _make_first_att_kernel(w_img, pad_left, s1pad):
    # tap -> (flattened lane offset, dw) with dh, dw in {-1, 0, 1}
    taps = [((kh - 1) * w_img + (kw - 1), kw - 1)
            for kh in range(3) for kw in range(3)]

    def kernel(flf_ref, xl_ref, wg1_ref, wx1_ref, b1_ref, p1w_ref, cm_ref,
               p1b_ref, o_ref):
        xl = xl_ref[...]                                              # (Cl, S1pad) f32
        # W_x1 1x1 conv (treated as the 10th tap; bias pre-summed with Wg1's).
        acc = jnp.dot(wx1_ref[...], xl.astype(MATMUL_DTYPE),
                      preferred_element_type=jnp.float32)
        flf = flf_ref[...]                                            # (C0, Sext) bf16
        for t, (off, dw) in enumerate(taps):
            start = pad_left + off                                    # static
            sl = flf[:, start:start + s1pad]                          # contiguous slice
            d = jnp.dot(wg1_ref[t], sl, preferred_element_type=jnp.float32)
            # Row (dh) boundaries are handled by the zero extension; only the
            # column (dw) boundaries need masking.
            if dw == -1:
                d = d * cm_ref[0:1, :]
            elif dw == 1:
                d = d * cm_ref[1:2, :]
            acc = acc + d
        h = jnp.maximum(acc + b1_ref[...], 0.0)
        # psi1 (C -> 1): broadcast-mul + sublane reduce (no 1-wide matmul/output).
        s = jnp.sum(h * p1w_ref[...], axis=0, keepdims=True) + p1b_ref[0, 0]
        o_ref[...] = xl * jax.nn.sigmoid(s)

    return kernel


def fused_first_attention(flf_ext, xl_flat, wg1_taps, wx1, b1, p1w, p1b, cmask,
                          w_img, pad_left):
    B, C0, Sext = flf_ext.shape
    _, Cl, S1pad = xl_flat.shape
    kernel = _make_first_att_kernel(w_img, pad_left, S1pad)
    return pl.pallas_call(
        kernel,
        out_shape=jax.ShapeDtypeStruct((B, Cl, S1pad), jnp.float32),
        grid=(B,),
        in_specs=[
            pl.BlockSpec((None, C0, Sext), lambda b: (b, 0, 0)),
            pl.BlockSpec((None, Cl, S1pad), lambda b: (b, 0, 0)),
            pl.BlockSpec((9, Cl, C0), lambda b: (0, 0, 0)),
            pl.BlockSpec((Cl, Cl), lambda b: (0, 0)),
            pl.BlockSpec((Cl, 1), lambda b: (0, 0)),
            pl.BlockSpec((Cl, 1), lambda b: (0, 0)),
            pl.BlockSpec((2, S1pad), lambda b: (0, 0)),
            pl.BlockSpec(memory_space=pltpu.MemorySpace.SMEM),        # psi1 bias
        ],
        out_specs=pl.BlockSpec((None, Cl, S1pad), lambda b: (b, 0, 0)),
        compiler_params=pltpu.CompilerParams(
            dimension_semantics=("parallel",),
            vmem_limit_bytes=_VMEM_LIMIT),
    )(flf_ext, xl_flat, wg1_taps, wx1, b1, p1w, cmask, p1b)


# ----------------------------------------------------------------------------
# Kernel 2a: second attention gate att2 = sigmoid(psi2(relu([Wg2|Wx2]@[xg;cols2]+b)))
# ----------------------------------------------------------------------------
def _att2_kernel(gcat_ref, wcat_ref, b2_ref, p2w_ref, p2b_ref, o_ref):
    h = jnp.dot(wcat_ref[...], gcat_ref[...],
                preferred_element_type=jnp.float32) + b2_ref[...]
    h = jnp.maximum(h, 0.0)
    s = jnp.sum(h * p2w_ref[...], axis=0, keepdims=True) + p2b_ref[0, 0]
    o_ref[...] = jax.nn.sigmoid(s)


def fused_second_gate(gcat, wcat, b2, p2w, p2b):
    B, K2, S2pad = gcat.shape
    Cg = wcat.shape[0]
    return pl.pallas_call(
        _att2_kernel,
        out_shape=jax.ShapeDtypeStruct((B, 1, S2pad), jnp.float32),
        grid=(B,),
        in_specs=[
            pl.BlockSpec((None, K2, S2pad), lambda b: (b, 0, 0)),
            pl.BlockSpec((Cg, K2), lambda b: (0, 0)),
            pl.BlockSpec((Cg, 1), lambda b: (0, 0)),
            pl.BlockSpec((Cg, 1), lambda b: (0, 0)),
            pl.BlockSpec(memory_space=pltpu.MemorySpace.SMEM),        # psi2 bias
        ],
        out_specs=pl.BlockSpec((None, 1, S2pad), lambda b: (b, 0, 0)),
        compiler_params=pltpu.CompilerParams(
            dimension_semantics=("parallel",),
            vmem_limit_bytes=_VMEM_LIMIT),
    )(gcat, wcat, b2, p2w, p2b)


# ----------------------------------------------------------------------------
# Kernel 2b: separable align_corners=True upsample of att2 + final multiply,
#            lane-dense (Cl, tile_s) blocks over whole output rows.
# ----------------------------------------------------------------------------
def _make_upsample_mul_kernel(rpt):
    def kernel(xl_ref, a2_ref, rh_ref, rwp_ref, ind_ref, o_ref):
        t = pl.program_id(1)
        rh_rows = rh_ref[pl.ds(t * rpt, rpt), :]                      # (rpt, Hg)
        up_cols = jnp.dot(rh_rows, a2_ref[...],
                          preferred_element_type=jnp.float32)         # (rpt, Wg)
        up_rows = jnp.dot(up_cols, rwp_ref[...],
                          preferred_element_type=jnp.float32)         # (rpt, tile_s)
        # Flatten (rpt output rows, W cols) -> (1, tile_s) via indicator reduce.
        up = jnp.sum(up_rows * ind_ref[...], axis=0, keepdims=True)   # (1, tile_s)
        o_ref[...] = xl_ref[...] * up
    return kernel


def fused_upsample_multiply(xl_att, att2_2d, rh_pad, rwp, ind):
    B, Cl, S1pad = xl_att.shape
    _, Hg, Wg = att2_2d.shape
    hrows_pad = rh_pad.shape[0]
    rpt, tile_s = ind.shape
    n_t = S1pad // tile_s
    kernel = _make_upsample_mul_kernel(rpt)
    return pl.pallas_call(
        kernel,
        out_shape=jax.ShapeDtypeStruct((B, Cl, S1pad), jnp.float32),
        grid=(B, n_t),
        in_specs=[
            pl.BlockSpec((None, Cl, tile_s), lambda b, t: (b, 0, t)),
            pl.BlockSpec((None, Hg, Wg), lambda b, t: (b, 0, 0)),
            pl.BlockSpec((hrows_pad, Hg), lambda b, t: (0, 0)),
            pl.BlockSpec((Wg, tile_s), lambda b, t: (0, 0)),
            pl.BlockSpec((rpt, tile_s), lambda b, t: (0, 0)),
        ],
        out_specs=pl.BlockSpec((None, Cl, tile_s), lambda b, t: (b, 0, t)),
        compiler_params=pltpu.CompilerParams(
            dimension_semantics=("parallel", "parallel"),
            vmem_limit_bytes=_VMEM_LIMIT),
    )(xl_att, att2_2d, rh_pad, rwp, ind)


# ----------------------------------------------------------------------------
# JAX glue: channels-major im2col (second conv only) and weight reshaping
# ----------------------------------------------------------------------------
def im2col_cm(x_nchw, ksize, stride, pad, out_dtype):
    """NCHW -> channels-major im2col: (B, k*k*C, Ho*Wo), tap-major (kh, kw, c)."""
    B, C, H, W = x_nchw.shape
    xp = jnp.pad(x_nchw, ((0, 0), (0, 0), (pad, pad), (pad, pad)))
    Ho = (H + 2 * pad - ksize) // stride + 1
    Wo = (W + 2 * pad - ksize) // stride + 1
    taps = []
    for kh in range(ksize):
        for kw in range(ksize):
            taps.append(xp[:, :, kh:kh + stride * Ho:stride,
                           kw:kw + stride * Wo:stride])
    cols = jnp.stack(taps, axis=1)                       # (B, k*k, C, Ho, Wo)
    return cols.reshape(B, ksize * ksize * C, Ho * Wo).astype(out_dtype)


def w_1x1_cm(w):      # (Cout, Cin, 1, 1) -> (Cout, Cin)
    return w[:, :, 0, 0]


def w_3x3_cm(w):      # (Cout, Cin, 3, 3) -> (Cout, 9*Cin), tap-major (kh, kw, cin)
    return jnp.transpose(w, (0, 2, 3, 1)).reshape(w.shape[0], -1)


# ----------------------------------------------------------------------------
# Parameters (deterministic synthetic init, PyTorch Conv2d weight conventions)
# ----------------------------------------------------------------------------
def init_params(key, channel_l, channel_g, init_channel):
    ks = jax.random.split(key, 12)
    w = lambda k, shape: jax.random.normal(k, shape, jnp.float32) * 0.1
    return {
        "Wx1_w": w(ks[0], (channel_l, channel_l, 1, 1)),
        "Wx1_b": w(ks[1], (channel_l,)),
        "Wx2_w": w(ks[2], (channel_g, channel_l, 3, 3)),
        "Wx2_b": w(ks[3], (channel_g,)),
        "Wg1_w": w(ks[4], (channel_l, init_channel, 3, 3)),
        "Wg1_b": w(ks[5], (channel_l,)),
        "Wg2_w": w(ks[6], (channel_g, channel_g, 1, 1)),
        "Wg2_b": w(ks[7], (channel_g,)),
        "psi1_w": w(ks[8], (1, channel_l, 1, 1)),
        "psi1_b": w(ks[9], (1,)),
        "psi2_w": w(ks[10], (1, channel_g, 1, 1)),
        "psi2_b": w(ks[11], (1,)),
    }


# ----------------------------------------------------------------------------
# CSA2D forward (Pallas)
# ----------------------------------------------------------------------------
def csa2d_forward(params, x_l, x_g, first_layer_f):
    B, Cl, H, W = x_l.shape
    _, Cg, Hg, Wg = x_g.shape
    _, C0, Hf, Wf = first_layer_f.shape
    # TODO(synk): PyTorch bilinearly resizes intermediates on spatial mismatch
    # (W_g1 output vs W_x1 output, W_x2 output vs x_g); those branches are not
    # exercised by these shapes and are unhandled here.
    assert (Hf, Wf) == (H, W)
    assert (Hg, Wg) == ((H + 1) // 2, (W + 1) // 2)

    f32 = jnp.float32
    S1, S2 = H * W, Hg * Wg
    tile_s = _pick_spatial_tile(S1, W)
    S1pad = _round_up(S1, tile_s)                 # multiple of tile_s, 128 and W
    S2pad = _round_up(S2, 128)
    pad_left = W + 1                              # halo so every tap slice is in-bounds
    Sext = _round_up(S1pad + 2 * (W + 1), 128)

    # ---- first attention ---------------------------------------------------
    xl_flat = jnp.pad(x_l.astype(f32).reshape(B, Cl, S1),
                      ((0, 0), (0, 0), (0, S1pad - S1)))
    flf_ext = jnp.pad(first_layer_f.astype(MATMUL_DTYPE).reshape(B, C0, S1),
                      ((0, 0), (0, 0), (pad_left, Sext - pad_left - S1)))

    wg1_taps = jnp.transpose(params["Wg1_w"], (2, 3, 0, 1)).reshape(9, Cl, C0)
    wg1_taps = wg1_taps.astype(MATMUL_DTYPE)
    wx1 = params["Wx1_w"][:, :, 0, 0].astype(MATMUL_DTYPE)
    b1 = (params["Wg1_b"] + params["Wx1_b"]).reshape(Cl, 1).astype(f32)
    p1w = params["psi1_w"][0, :, 0, 0].reshape(Cl, 1).astype(f32)
    p1b = params["psi1_b"].reshape(1, 1).astype(f32)

    w_col = np.arange(S1pad) % W
    cmask = jnp.asarray(np.stack([(w_col >= 1),
                                  (w_col <= W - 2)]).astype(np.float32))

    xl_att = fused_first_attention(flf_ext, xl_flat, wg1_taps, wx1, b1, p1w,
                                   p1b, cmask, W, pad_left)    # (B, Cl, S1pad) f32

    # ---- second attention gate (att2 at Hg x Wg) ----------------------------
    # TODO(synk): cols2 is still built in HBM (stride-2 taps); fold into the
    # gate kernel with strided in-kernel gathers to remove the last im2col.
    if S1pad == S1:
        xl_att_img = xl_att.reshape(B, Cl, H, W)
    else:
        xl_att_img = xl_att[:, :, :S1].reshape(B, Cl, H, W)
    cols2 = im2col_cm(xl_att_img, 3, 2, 1, MATMUL_DTYPE)           # (B, 9*Cl, S2)
    xg_flat = x_g.reshape(B, Cg, S2).astype(MATMUL_DTYPE)
    gcat = jnp.pad(jnp.concatenate([xg_flat, cols2], axis=1),
                   ((0, 0), (0, 0), (0, S2pad - S2)))
    wcat = jnp.concatenate([w_1x1_cm(params["Wg2_w"]),
                            w_3x3_cm(params["Wx2_w"])],
                           axis=1).astype(MATMUL_DTYPE)
    b2 = (params["Wg2_b"] + params["Wx2_b"]).reshape(Cg, 1).astype(f32)
    p2w = params["psi2_w"][0, :, 0, 0].reshape(Cg, 1).astype(f32)
    p2b = params["psi2_b"].reshape(1, 1).astype(f32)

    att2_flat = fused_second_gate(gcat, wcat, b2, p2w, p2b)        # (B, 1, S2pad)
    att2_2d = att2_flat[:, 0, :S2].reshape(B, Hg, Wg)              # free-ish reshape

    # ---- separable align_corners=True upsample + final multiply -------------
    rpt = tile_s // W
    hrows_pad = S1pad // W
    rh_np = np.zeros((hrows_pad, Hg), np.float32)
    rh_np[:H] = _interp_matrix_np(H, Hg)
    rw_np = _interp_matrix_np(W, Wg)                               # (W, Wg)
    j = np.arange(tile_s)
    rwp_np = rw_np[j % W, :].T.astype(np.float32)                  # (Wg, tile_s)
    ind_np = (j // W == np.arange(rpt)[:, None]).astype(np.float32)  # (rpt, tile_s)

    out_pad = fused_upsample_multiply(xl_att, att2_2d,
                                      jnp.asarray(rh_np),
                                      jnp.asarray(rwp_np),
                                      jnp.asarray(ind_np))         # (B, Cl, S1pad)
    if S1pad == S1:
        return out_pad.reshape(B, Cl, H, W)
    return out_pad[:, :, :S1].reshape(B, Cl, H, W)


# ----------------------------------------------------------------------------
# Pure-JAX reference (PyTorch semantics; conv_dtype mirrors the kernel's bf16 casts)
# ----------------------------------------------------------------------------
def csa2d_reference(params, x_l, x_g, first_layer_f, conv_dtype=jnp.float32):
    def conv(x, w, b, stride, pad, dtype):
        y = jax.lax.conv_general_dilated(
            x.astype(dtype), w.astype(dtype), (stride, stride),
            [(pad, pad), (pad, pad)],
            dimension_numbers=("NCHW", "OIHW", "NCHW"),
            preferred_element_type=jnp.float32)
        return y + b.reshape(1, -1, 1, 1).astype(jnp.float32)

    f32 = jnp.float32
    fla = conv(first_layer_f, params["Wg1_w"], params["Wg1_b"], 1, 1, conv_dtype)
    xla = conv(x_l, params["Wx1_w"], params["Wx1_b"], 1, 0, conv_dtype)
    att1 = jax.nn.sigmoid(conv(jnp.maximum(fla + xla, 0.0),
                               params["psi1_w"], params["psi1_b"], 1, 0, f32))
    xl_att = x_l.astype(f32) * att1
    xga = conv(x_g, params["Wg2_w"], params["Wg2_b"], 1, 0, conv_dtype)
    xlc = conv(xl_att, params["Wx2_w"], params["Wx2_b"], 2, 1, conv_dtype)
    att2 = jax.nn.sigmoid(conv(jnp.maximum(xga + xlc, 0.0),
                               params["psi2_w"], params["psi2_b"], 1, 0, f32))
    B, _, H, W = x_l.shape
    Hg, Wg = att2.shape[2], att2.shape[3]
    rh = jnp.asarray(_interp_matrix_np(H, Hg))
    rw = jnp.asarray(_interp_matrix_np(W, Wg))
    att2_up = jnp.einsum("hi,bcij,wj->bchw", rh, att2, rw)
    return xl_att * att2_up


# ----------------------------------------------------------------------------
if __name__ == "__main__":
    B, channel_l, channel_g, init_channel = 2, 4, 8, 6
    H = W = 16
    Hg = Wg = 8

    key = jax.random.PRNGKey(0)
    kp, k1, k2, k3 = jax.random.split(key, 4)
    params = init_params(kp, channel_l, channel_g, init_channel)

    x_l = jax.random.normal(k1, (B, channel_l, H, W), jnp.float32)
    x_g = jax.random.normal(k2, (B, channel_g, Hg, Wg), jnp.float32)
    first_layer_f = jax.random.normal(k3, (B, init_channel, H, W), jnp.float32)

    fwd = jax.jit(csa2d_forward)
    out = jax.block_until_ready(fwd(params, x_l, x_g, first_layer_f))
    assert out.shape == (B, channel_l, H, W)

    # Tight check against a reference using the same bf16 conv operands.
    ref_b = jax.block_until_ready(
        csa2d_reference(params, x_l, x_g, first_layer_f, conv_dtype=MATMUL_DTYPE))
    err_b = float(jnp.max(jnp.abs(out - ref_b)))
    assert err_b < 5e-3, err_b

    # Loose check against the exact f32 semantics of the PyTorch module.
    ref_f = jax.block_until_ready(
        csa2d_reference(params, x_l, x_g, first_layer_f, conv_dtype=jnp.float32))
    err_f = float(jnp.max(jnp.abs(out - ref_f)))
    assert err_f < 1e-1, err_f

    print("KERNEL_OK")
</pallas_src>

<mosaic_0001>
module attributes {stable_mosaic.version = 11 : i64} {
  func.func @kernel(%arg0: i32, %arg1: memref<1x6x384xbf16, #tpu.memory_space<vmem>>, %arg2: memref<1x4x256xf32, #tpu.memory_space<vmem>>, %arg3: memref<9x4x6xbf16, #tpu.memory_space<vmem>>, %arg4: memref<4x4xbf16, #tpu.memory_space<vmem>>, %arg5: memref<4x1xf32, #tpu.memory_space<vmem>>, %arg6: memref<4x1xf32, #tpu.memory_space<vmem>>, %arg7: memref<2x256xf32, #tpu.memory_space<vmem>>, %arg8: memref<1x1xf32, #tpu.memory_space<smem>>, %arg9: memref<1x4x256xf32, #tpu.memory_space<vmem>>) attributes {dimension_semantics = [#tpu.dimension_semantics<parallel>], iteration_bounds = array<i64: 2>, scalar_prefetch = 0 : i64, scratch_operands = 0 : i64, tpu.core_type = #tpu.core_type<tc>, window_params = [{transform_indices = @transform_0, window_bounds = array<i64: 1, 6, 384>}, {transform_indices = @transform_1, window_bounds = array<i64: 1, 4, 256>}, {pipeline_mode = #tpu.pipeline_mode<synchronous>, transform_indices = @transform_2, window_bounds = array<i64: 9, 4, 6>}, {pipeline_mode = #tpu.pipeline_mode<synchronous>, transform_indices = @transform_3, window_bounds = array<i64: 4, 4>}, {pipeline_mode = #tpu.pipeline_mode<synchronous>, transform_indices = @transform_4, window_bounds = array<i64: 4, 1>}, {pipeline_mode = #tpu.pipeline_mode<synchronous>, transform_indices = @transform_5, window_bounds = array<i64: 4, 1>}, {pipeline_mode = #tpu.pipeline_mode<synchronous>, transform_indices = @transform_6, window_bounds = array<i64: 2, 256>}, {transform_indices = @transform_7, window_bounds = array<i64: 1, 1>}, {transform_indices = @transform_8, window_bounds = array<i64: 1, 4, 256>}]} {
    %c0 = arith.constant 0 : index
    %c0_0 = arith.constant 0 : index
    %c0_1 = arith.constant 0 : index
    %0 = vector.load %arg2[%c0, %c0_0, %c0_1] : memref<1x4x256xf32, #tpu.memory_space<vmem>>, vector<1x4x256xf32>
    %1 = vector.shape_cast %0 : vector<1x4x256xf32> to vector<4x256xf32>
    %c0_2 = arith.constant 0 : index
    %c0_3 = arith.constant 0 : index
    %2 = vector.load %arg4[%c0_2, %c0_3] : memref<4x4xbf16, #tpu.memory_space<vmem>>, vector<4x4xbf16>
    %3 = arith.truncf %1 : vector<4x256xf32> to vector<4x256xbf16>
    %cst = arith.constant dense<0.000000e+00> : vector<4x256xf32>
    %4 = tpu.matmul %2, %3, %cst {dimension_numbers = #tpu.dot_dimension_numbers<[1], [0], [0], [1], [0, 0, 1, 1], [], []>} : vector<4x4xbf16>, vector<4x256xbf16>, vector<4x256xf32> -> vector<4x256xf32>
    %c0_4 = arith.constant 0 : index
    %c0_5 = arith.constant 0 : index
    %c0_6 = arith.constant 0 : index
    %5 = vector.load %arg1[%c0_4, %c0_5, %c0_6] : memref<1x6x384xbf16, #tpu.memory_space<vmem>>, vector<1x6x384xbf16>
    %6 = vector.shape_cast %5 : vector<1x6x384xbf16> to vector<6x384xbf16>
    %7 = vector.extract_strided_slice %6 {offsets = [0, 0], sizes = [6, 256], strides = [1, 1]} : vector<6x384xbf16> to vector<6x256xbf16>
    %c0_7 = arith.constant 0 : index
    %c0_8 = arith.constant 0 : index
    %c0_9 = arith.constant 0 : index
    %8 = vector.load %arg3[%c0_7, %c0_8, %c0_9] : memref<9x4x6xbf16, #tpu.memory_space<vmem>>, vector<1x4x6xbf16>
    %9 = vector.shape_cast %8 : vector<1x4x6xbf16> to vector<4x6xbf16>
    %cst_10 = arith.constant dense<0.000000e+00> : vector<4x256xf32>
    %10 = tpu.matmul %9, %7, %cst_10 {dimension_numbers = #tpu.dot_dimension_numbers<[1], [0], [0], [1], [0, 0, 1, 1], [], []>} : vector<4x6xbf16>, vector<6x256xbf16>, vector<4x256xf32> -> vector<4x256xf32>
    %c0_11 = arith.constant 0 : index
    %c0_12 = arith.constant 0 : index
    %11 = vector.load %arg7[%c0_11, %c0_12] : memref<2x256xf32, #tpu.memory_space<vmem>>, vector<1x256xf32>
    %12 = vector.broadcast %11 : vector<1x256xf32> to vector<4x256xf32>
    %13 = arith.mulf %10, %12 : vector<4x256xf32>
    %14 = arith.addf %4, %13 : vector<4x256xf32>
    %15 = vector.extract_strided_slice %6 {offsets = [0, 1], sizes = [6, 256], strides = [1, 1]} : vector<6x384xbf16> to vector<6x256xbf16>
    %c1 = arith.constant 1 : index
    %c0_13 = arith.constant 0 : index
    %c0_14 = arith.constant 0 : index
    %16 = vector.load %arg3[%c1, %c0_13, %c0_14] : memref<9x4x6xbf16, #tpu.memory_space<vmem>>, vector<1x4x6xbf16>
    %17 = vector.shape_cast %16 : vector<1x4x6xbf16> to vector<4x6xbf16>
    %cst_15 = arith.constant dense<0.000000e+00> : vector<4x256xf32>
    %18 = tpu.matmul %17, %15, %cst_15 {dimension_numbers = #tpu.dot_dimension_numbers<[1], [0], [0], [1], [0, 0, 1, 1], [], []>} : vector<4x6xbf16>, vector<6x256xbf16>, vector<4x256xf32> -> vector<4x256xf32>
    %19 = arith.addf %14, %18 : vector<4x256xf32>
    %20 = vector.extract_strided_slice %6 {offsets = [0, 2], sizes = [6, 256], strides = [1, 1]} : vector<6x384xbf16> to vector<6x256xbf16>
    %c2 = arith.constant 2 : index
    %c0_16 = arith.constant 0 : index
    %c0_17 = arith.constant 0 : index
    %21 = vector.load %arg3[%c2, %c0_16, %c0_17] : memref<9x4x6xbf16, #tpu.memory_space<vmem>>, vector<1x4x6xbf16>
    %22 = vector.shape_cast %21 : vector<1x4x6xbf16> to vector<4x6xbf16>
    %cst_18 = arith.constant dense<0.000000e+00> : vector<4x256xf32>
    %23 = tpu.matmul %22, %20, %cst_18 {dimension_numbers = #tpu.dot_dimension_numbers<[1], [0], [0], [1], [0, 0, 1, 1], [], []>} : vector<4x6xbf16>, vector<6x256xbf16>, vector<4x256xf32> -> vector<4x256xf32>
    %c1_19 = arith.constant 1 : index
    %c0_20 = arith.constant 0 : index
    %24 = vector.load %arg7[%c1_19, %c0_20] : memref<2x256xf32, #tpu.memory_space<vmem>>, vector<1x256xf32>
    %25 = vector.broadcast %24 : vector<1x256xf32> to vector<4x256xf32>
    %26 = arith.mulf %23, %25 : vector<4x256xf32>
    %27 = arith.addf %19, %26 : vector<4x256xf32>
    %28 = vector.extract_strided_slice %6 {offsets = [0, 16], sizes = [6, 256], strides = [1, 1]} : vector<6x384xbf16> to vector<6x256xbf16>
    %c3 = arith.constant 3 : index
    %c0_21 = arith.constant 0 : index
    %c0_22 = arith.constant 0 : index
    %29 = vector.load %arg3[%c3, %c0_21, %c0_22] : memref<9x4x6xbf16, #tpu.memory_space<vmem>>, vector<1x4x6xbf16>
    %30 = vector.shape_cast %29 : vector<1x4x6xbf16> to vector<4x6xbf16>
    %cst_23 = arith.constant dense<0.000000e+00> : vector<4x256xf32>
    %31 = tpu.matmul %30, %28, %cst_23 {dimension_numbers = #tpu.dot_dimension_numbers<[1], [0], [0], [1], [0, 0, 1, 1], [], []>} : vector<4x6xbf16>, vector<6x256xbf16>, vector<4x256xf32> -> vector<4x256xf32>
    %c0_24 = arith.constant 0 : index
    %c0_25 = arith.constant 0 : index
    %32 = vector.load %arg7[%c0_24, %c0_25] : memref<2x256xf32, #tpu.memory_space<vmem>>, vector<1x256xf32>
    %33 = vector.broadcast %32 : vector<1x256xf32> to vector<4x256xf32>
    %34 = arith.mulf %31, %33 : vector<4x256xf32>
    %35 = arith.addf %27, %34 : vector<4x256xf32>
    %36 = vector.extract_strided_slice %6 {offsets = [0, 17], sizes = [6, 256], strides = [1, 1]} : vector<6x384xbf16> to vector<6x256xbf16>
    %c4 = arith.constant 4 : index
    %c0_26 = arith.constant 0 : index
    %c0_27 = arith.constant 0 : index
    %37 = vector.load %arg3[%c4, %c0_26, %c0_27] : memref<9x4x6xbf16, #tpu.memory_space<vmem>>, vector<1x4x6xbf16>
    %38 = vector.shape_cast %37 : vector<1x4x6xbf16> to vector<4x6xbf16>
    %cst_28 = arith.constant dense<0.000000e+00> : vector<4x256xf32>
    %39 = tpu.matmul %38, %36, %cst_28 {dimension_numbers = #tpu.dot_dimension_numbers<[1], [0], [0], [1], [0, 0, 1, 1], [], []>} : vector<4x6xbf16>, vector<6x256xbf16>, vector<4x256xf32> -> vector<4x256xf32>
    %40 = arith.addf %35, %39 : vector<4x256xf32>
    %41 = vector.extract_strided_slice %6 {offsets = [0, 18], sizes = [6, 256], strides = [1, 1]} : vector<6x384xbf16> to vector<6x256xbf16>
    %c5 = arith.constant 5 : index
    %c0_29 = arith.constant 0 : index
    %c0_30 = arith.constant 0 : index
    %42 = vector.load %arg3[%c5, %c0_29, %c0_30] : memref<9x4x6xbf16, #tpu.memory_space<vmem>>, vector<1x4x6xbf16>
    %43 = vector.shape_cast %42 : vector<1x4x6xbf16> to vector<4x6xbf16>
    %cst_31 = arith.constant dense<0.000000e+00> : vector<4x256xf32>
    %44 = tpu.matmul %43, %41, %cst_31 {dimension_numbers = #tpu.dot_dimension_numbers<[1], [0], [0], [1], [0, 0, 1, 1], [], []>} : vector<4x6xbf16>, vector<6x256xbf16>, vector<4x256xf32> -> vector<4x256xf32>
    %c1_32 = arith.constant 1 : index
    %c0_33 = arith.constant 0 : index
    %45 = vector.load %arg7[%c1_32, %c0_33] : memref<2x256xf32, #tpu.memory_space<vmem>>, vector<1x256xf32>
    %46 = vector.broadcast %45 : vector<1x256xf32> to vector<4x256xf32>
    %47 = arith.mulf %44, %46 : vector<4x256xf32>
    %48 = arith.addf %40, %47 : vector<4x256xf32>
    %49 = vector.extract_strided_slice %6 {offsets = [0, 32], sizes = [6, 256], strides = [1, 1]} : vector<6x384xbf16> to vector<6x256xbf16>
    %c6 = arith.constant 6 : index
    %c0_34 = arith.constant 0 : index
    %c0_35 = arith.constant 0 : index
    %50 = vector.load %arg3[%c6, %c0_34, %c0_35] : memref<9x4x6xbf16, #tpu.memory_space<vmem>>, vector<1x4x6xbf16>
    %51 = vector.shape_cast %50 : vector<1x4x6xbf16> to vector<4x6xbf16>
    %cst_36 = arith.constant dense<0.000000e+00> : vector<4x256xf32>
    %52 = tpu.matmul %51, %49, %cst_36 {dimension_numbers = #tpu.dot_dimension_numbers<[1], [0], [0], [1], [0, 0, 1, 1], [], []>} : vector<4x6xbf16>, vector<6x256xbf16>, vector<4x256xf32> -> vector<4x256xf32>
    %c0_37 = arith.constant 0 : index
    %c0_38 = arith.constant 0 : index
    %53 = vector.load %arg7[%c0_37, %c0_38] : memref<2x256xf32, #tpu.memory_space<vmem>>, vector<1x256xf32>
    %54 = vector.broadcast %53 : vector<1x256xf32> to vector<4x256xf32>
    %55 = arith.mulf %52, %54 : vector<4x256xf32>
    %56 = arith.addf %48, %55 : vector<4x256xf32>
    %57 = vector.extract_strided_slice %6 {offsets = [0, 33], sizes = [6, 256], strides = [1, 1]} : vector<6x384xbf16> to vector<6x256xbf16>
    %c7 = arith.constant 7 : index
    %c0_39 = arith.constant 0 : index
    %c0_40 = arith.constant 0 : index
    %58 = vector.load %arg3[%c7, %c0_39, %c0_40] : memref<9x4x6xbf16, #tpu.memory_space<vmem>>, vector<1x4x6xbf16>
    %59 = vector.shape_cast %58 : vector<1x4x6xbf16> to vector<4x6xbf16>
    %cst_41 = arith.constant dense<0.000000e+00> : vector<4x256xf32>
    %60 = tpu.matmul %59, %57, %cst_41 {dimension_numbers = #tpu.dot_dimension_numbers<[1], [0], [0], [1], [0, 0, 1, 1], [], []>} : vector<4x6xbf16>, vector<6x256xbf16>, vector<4x256xf32> -> vector<4x256xf32>
    %61 = arith.addf %56, %60 : vector<4x256xf32>
    %62 = vector.extract_strided_slice %6 {offsets = [0, 34], sizes = [6, 256], strides = [1, 1]} : vector<6x384xbf16> to vector<6x256xbf16>
    %c8 = arith.constant 8 : index
    %c0_42 = arith.constant 0 : index
    %c0_43 = arith.constant 0 : index
    %63 = vector.load %arg3[%c8, %c0_42, %c0_43] : memref<9x4x6xbf16, #tpu.memory_space<vmem>>, vector<1x4x6xbf16>
    %64 = vector.shape_cast %63 : vector<1x4x6xbf16> to vector<4x6xbf16>
    %cst_44 = arith.constant dense<0.000000e+00> : vector<4x256xf32>
    %65 = tpu.matmul %64, %62, %cst_44 {dimension_numbers = #tpu.dot_dimension_numbers<[1], [0], [0], [1], [0, 0, 1, 1], [], []>} : vector<4x6xbf16>, vector<6x256xbf16>, vector<4x256xf32> -> vector<4x256xf32>
    %c1_45 = arith.constant 1 : index
    %c0_46 = arith.constant 0 : index
    %66 = vector.load %arg7[%c1_45, %c0_46] : memref<2x256xf32, #tpu.memory_space<vmem>>, vector<1x256xf32>
    %67 = vector.broadcast %66 : vector<1x256xf32> to vector<4x256xf32>
    %68 = arith.mulf %65, %67 : vector<4x256xf32>
    %69 = arith.addf %61, %68 : vector<4x256xf32>
    %c0_47 = arith.constant 0 : index
    %c0_48 = arith.constant 0 : index
    %70 = vector.load %arg5[%c0_47, %c0_48] : memref<4x1xf32, #tpu.memory_space<vmem>>, vector<4x1xf32>
    %71 = vector.broadcast %70 : vector<4x1xf32> to vector<4x256xf32>
    %72 = arith.addf %69, %71 : vector<4x256xf32>
    %cst_49 = arith.constant 0.000000e+00 : f32
    %73 = vector.broadcast %cst_49 : f32 to vector<4x256xf32>
    %74 = arith.maximumf %72, %73 : vector<4x256xf32>
    %c0_50 = arith.constant 0 : index
    %c0_51 = arith.constant 0 : index
    %75 = vector.load %arg6[%c0_50, %c0_51] : memref<4x1xf32, #tpu.memory_space<vmem>>, vector<4x1xf32>
    %76 = vector.broadcast %75 : vector<4x1xf32> to vector<4x256xf32>
    %77 = arith.mulf %74, %76 : vector<4x256xf32>
    %cst_52 = arith.constant dense<0.000000e+00> : vector<256xf32>
    %78 = vector.multi_reduction <add>, %77, %cst_52 [0] : vector<4x256xf32> to vector<256xf32>
    %79 = vector.shape_cast %78 : vector<256xf32> to vector<1x256xf32>
    %c0_53 = arith.constant 0 : index
    %c0_54 = arith.constant 0 : index
    %80 = memref.load %arg8[%c0_53, %c0_54] : memref<1x1xf32, #tpu.memory_space<smem>>
    %81 = vector.broadcast %80 : f32 to vector<1x256xf32>
    %82 = arith.addf %79, %81 : vector<1x256xf32>
    %83 = arith.negf %82 : vector<1x256xf32>
    %84 = math.exp %83 : vector<1x256xf32>
    %cst_55 = arith.constant 1.000000e+00 : f32
    %85 = vector.broadcast %cst_55 : f32 to vector<1x256xf32>
    %86 = arith.addf %85, %84 : vector<1x256xf32>
    %87 = arith.divf %85, %86 : vector<1x256xf32>
    %88 = vector.broadcast %87 : vector<1x256xf32> to vector<4x256xf32>
    %89 = arith.mulf %1, %88 : vector<4x256xf32>
    %c0_56 = arith.constant 0 : index
    %c0_57 = arith.constant 0 : index
    %c0_58 = arith.constant 0 : index
    %90 = vector.load %arg9[%c0_56, %c0_57, %c0_58] : memref<1x4x256xf32, #tpu.memory_space<vmem>>, vector<1x4x256xf32>
    %91 = vector.shape_cast %90 : vector<1x4x256xf32> to vector<4x256xf32>
    %92 = vector.shape_cast %89 : vector<4x256xf32> to vector<1x4x256xf32>
    tpu.vector_store %arg9[%c0_56, %c0_57, %c0_58], %92 {strides = array<i32>} : memref<1x4x256xf32, #tpu.memory_space<vmem>>, vector<1x4x256xf32>,
    return
  }
  func.func @transform_0(%arg0: i32) -> (i32, i32, i32) {
    %c0_i32 = arith.constant 0 : i32
    %c0_i32_0 = arith.constant 0 : i32
    %c0_i32_1 = arith.constant 0 : i32
    return %arg0, %c0_i32, %c0_i32_0 : i32, i32, i32
  }
  func.func @transform_1(%arg0: i32) -> (i32, i32, i32) {
    %c0_i32 = arith.constant 0 : i32
    %c0_i32_0 = arith.constant 0 : i32
    %c0_i32_1 = arith.constant 0 : i32
    return %arg0, %c0_i32, %c0_i32_0 : i32, i32, i32
  }
  func.func @transform_2(%arg0: i32) -> (i32, i32, i32) {
    %c0_i32 = arith.constant 0 : i32
    %c0_i32_0 = arith.constant 0 : i32
    %c0_i32_1 = arith.constant 0 : i32
    %c0_i32_2 = arith.constant 0 : i32
    return %c0_i32, %c0_i32_0, %c0_i32_1 : i32, i32, i32
  }
  func.func @transform_3(%arg0: i32) -> (i32, i32) {
    %c0_i32 = arith.constant 0 : i32
    %c0_i32_0 = arith.constant 0 : i32
    %c0_i32_1 = arith.constant 0 : i32
    return %c0_i32, %c0_i32_0 : i32, i32
  }
  func.func @transform_4(%arg0: i32) -> (i32, i32) {
    %c0_i32 = arith.constant 0 : i32
    %c0_i32_0 = arith.constant 0 : i32
    %c0_i32_1 = arith.constant 0 : i32
    return %c0_i32, %c0_i32_0 : i32, i32
  }
  func.func @transform_5(%arg0: i32) -> (i32, i32) {
    %c0_i32 = arith.constant 0 : i32
    %c0_i32_0 = arith.constant 0 : i32
    %c0_i32_1 = arith.constant 0 : i32
    return %c0_i32, %c0_i32_0 : i32, i32
  }
  func.func @transform_6(%arg0: i32) -> (i32, i32) {
    %c0_i32 = arith.constant 0 : i32
    %c0_i32_0 = arith.constant 0 : i32
    %c0_i32_1 = arith.constant 0 : i32
    return %c0_i32, %c0_i32_0 : i32, i32
  }
  func.func @transform_7(%arg0: i32) -> (i32, i32) {
    %c0_i32 = arith.constant 0 : i32
    %c0_i32_0 = arith.constant 0 : i32
    %c0_i32_1 = arith.constant 0 : i32
    return %c0_i32, %c0_i32_0 : i32, i32
  }
  func.func @transform_8(%arg0: i32) -> (i32, i32, i32) {
    %c0_i32 = arith.constant 0 : i32
    %c0_i32_0 = arith.constant 0 : i32
    %c0_i32_1 = arith.constant 0 : i32
    return %arg0, %c0_i32, %c0_i32_0 : i32, i32, i32
  }
}

module attributes {stable_mosaic.version = 11 : i64} {
  func.func @_att2_kernel(%arg0: i32, %arg1: memref<1x44x128xbf16, #tpu.memory_space<vmem>>, %arg2: memref<8x44xbf16, #tpu.memory_space<vmem>>, %arg3: memref<8x1xf32, #tpu.memory_space<vmem>>, %arg4: memref<8x1xf32, #tpu.memory_space<vmem>>, %arg5: memref<1x1xf32, #tpu.memory_space<smem>>, %arg6: memref<1x1x128xf32, #tpu.memory_space<vmem>>) attributes {dimension_semantics = [#tpu.dimension_semantics<parallel>], iteration_bounds = array<i64: 2>, scalar_prefetch = 0 : i64, scratch_operands = 0 : i64, tpu.core_type = #tpu.core_type<tc>, window_params = [{transform_indices = @transform_0, window_bounds = array<i64: 1, 44, 128>}, {pipeline_mode = #tpu.pipeline_mode<synchronous>, transform_indices = @transform_1, window_bounds = array<i64: 8, 44>}, {pipeline_mode = #tpu.pipeline_mode<synchronous>, transform_indices = @transform_2, window_bounds = array<i64: 8, 1>}, {pipeline_mode = #tpu.pipeline_mode<synchronous>, transform_indices = @transform_3, window_bounds = array<i64: 8, 1>}, {transform_indices = @transform_4, window_bounds = array<i64: 1, 1>}, {transform_indices = @transform_5, window_bounds = array<i64: 1, 1, 128>}]} {
    %c0 = arith.constant 0 : index
    %c0_0 = arith.constant 0 : index
    %0 = vector.load %arg2[%c0, %c0_0] : memref<8x44xbf16, #tpu.memory_space<vmem>>, vector<8x44xbf16>
    %c0_1 = arith.constant 0 : index
    %c0_2 = arith.constant 0 : index
    %c0_3 = arith.constant 0 : index
    %1 = vector.load %arg1[%c0_1, %c0_2, %c0_3] : memref<1x44x128xbf16, #tpu.memory_space<vmem>>, vector<1x44x128xbf16>
    %2 = vector.shape_cast %1 : vector<1x44x128xbf16> to vector<44x128xbf16>
    %cst = arith.constant dense<0.000000e+00> : vector<8x128xf32>
    %3 = tpu.matmul %0, %2, %cst {dimension_numbers = #tpu.dot_dimension_numbers<[1], [0], [0], [1], [0, 0, 1, 1], [], []>} : vector<8x44xbf16>, vector<44x128xbf16>, vector<8x128xf32> -> vector<8x128xf32>
    %c0_4 = arith.constant 0 : index
    %c0_5 = arith.constant 0 : index
    %4 = vector.load %arg3[%c0_4, %c0_5] : memref<8x1xf32, #tpu.memory_space<vmem>>, vector<8x1xf32>
    %5 = vector.broadcast %4 : vector<8x1xf32> to vector<8x128xf32>
    %6 = arith.addf %3, %5 : vector<8x128xf32>
    %cst_6 = arith.constant 0.000000e+00 : f32
    %7 = vector.broadcast %cst_6 : f32 to vector<8x128xf32>
    %8 = arith.maximumf %6, %7 : vector<8x128xf32>
    %c0_7 = arith.constant 0 : index
    %c0_8 = arith.constant 0 : index
    %9 = vector.load %arg4[%c0_7, %c0_8] : memref<8x1xf32, #tpu.memory_space<vmem>>, vector<8x1xf32>
    %10 = vector.broadcast %9 : vector<8x1xf32> to vector<8x128xf32>
    %11 = arith.mulf %8, %10 : vector<8x128xf32>
    %cst_9 = arith.constant dense<0.000000e+00> : vector<128xf32>
    %12 = vector.multi_reduction <add>, %11, %cst_9 [0] : vector<8x128xf32> to vector<128xf32>
    %13 = vector.shape_cast %12 : vector<128xf32> to vector<1x128xf32>
    %c0_10 = arith.constant 0 : index
    %c0_11 = arith.constant 0 : index
    %14 = memref.load %arg5[%c0_10, %c0_11] : memref<1x1xf32, #tpu.memory_space<smem>>
    %15 = vector.broadcast %14 : f32 to vector<1x128xf32>
    %16 = arith.addf %13, %15 : vector<1x128xf32>
    %17 = arith.negf %16 : vector<1x128xf32>
    %18 = math.exp %17 : vector<1x128xf32>
    %cst_12 = arith.constant 1.000000e+00 : f32
    %19 = vector.broadcast %cst_12 : f32 to vector<1x128xf32>
    %20 = arith.addf %19, %18 : vector<1x128xf32>
    %21 = arith.divf %19, %20 : vector<1x128xf32>
    %c0_13 = arith.constant 0 : index
    %c0_14 = arith.constant 0 : index
    %c0_15 = arith.constant 0 : index
    %22 = vector.load %arg6[%c0_13, %c0_14, %c0_15] : memref<1x1x128xf32, #tpu.memory_space<vmem>>, vector<1x1x128xf32>
    %23 = vector.shape_cast %22 : vector<1x1x128xf32> to vector<1x128xf32>
    %24 = vector.shape_cast %21 : vector<1x128xf32> to vector<1x1x128xf32>
    tpu.vector_store %arg6[%c0_13, %c0_14, %c0_15], %24 {strides = array<i32>} : memref<1x1x128xf32, #tpu.memory_space<vmem>>, vector<1x1x128xf32>,
    return
  }
  func.func @transform_0(%arg0: i32) -> (i32, i32, i32) {
    %c0_i32 = arith.constant 0 : i32
    %c0_i32_0 = arith.constant 0 : i32
    %c0_i32_1 = arith.constant 0 : i32
    return %arg0, %c0_i32, %c0_i32_0 : i32, i32, i32
  }
  func.func @transform_1(%arg0: i32) -> (i32, i32) {
    %c0_i32 = arith.constant 0 : i32
    %c0_i32_0 = arith.constant 0 : i32
    %c0_i32_1 = arith.constant 0 : i32
    return %c0_i32, %c0_i32_0 : i32, i32
  }
  func.func @transform_2(%arg0: i32) -> (i32, i32) {
    %c0_i32 = arith.constant 0 : i32
    %c0_i32_0 = arith.constant 0 : i32
    %c0_i32_1 = arith.constant 0 : i32
    return %c0_i32, %c0_i32_0 : i32, i32
  }
  func.func @transform_3(%arg0: i32) -> (i32, i32) {
    %c0_i32 = arith.constant 0 : i32
    %c0_i32_0 = arith.constant 0 : i32
    %c0_i32_1 = arith.constant 0 : i32
    return %c0_i32, %c0_i32_0 : i32, i32
  }
  func.func @transform_4(%arg0: i32) -> (i32, i32) {
    %c0_i32 = arith.constant 0 : i32
    %c0_i32_0 = arith.constant 0 : i32
    %c0_i32_1 = arith.constant 0 : i32
    return %c0_i32, %c0_i32_0 : i32, i32
  }
  func.func @transform_5(%arg0: i32) -> (i32, i32, i32) {
    %c0_i32 = arith.constant 0 : i32
    %c0_i32_0 = arith.constant 0 : i32
    %c0_i32_1 = arith.constant 0 : i32
    return %arg0, %c0_i32, %c0_i32_0 : i32, i32, i32
  }
}

module attributes {stable_mosaic.version = 11 : i64} {
  func.func @kernel(%arg0: i32, %arg1: i32, %arg2: memref<1x4x256xf32, #tpu.memory_space<vmem>>, %arg3: memref<1x8x8xf32, #tpu.memory_space<vmem>>, %arg4: memref<16x8xf32, #tpu.memory_space<vmem>>, %arg5: memref<8x256xf32, #tpu.memory_space<vmem>>, %arg6: memref<16x256xf32, #tpu.memory_space<vmem>>, %arg7: memref<1x4x256xf32, #tpu.memory_space<vmem>>) attributes {dimension_semantics = [#tpu.dimension_semantics<parallel>, #tpu.dimension_semantics<parallel>], iteration_bounds = array<i64: 2, 1>, scalar_prefetch = 0 : i64, scratch_operands = 0 : i64, tpu.core_type = #tpu.core_type<tc>, window_params = [{transform_indices = @transform_0, window_bounds = array<i64: 1, 4, 256>}, {transform_indices = @transform_1, window_bounds = array<i64: 1, 8, 8>}, {pipeline_mode = #tpu.pipeline_mode<synchronous>, transform_indices = @transform_2, window_bounds = array<i64: 16, 8>}, {pipeline_mode = #tpu.pipeline_mode<synchronous>, transform_indices = @transform_3, window_bounds = array<i64: 8, 256>}, {pipeline_mode = #tpu.pipeline_mode<synchronous>, transform_indices = @transform_4, window_bounds = array<i64: 16, 256>}, {transform_indices = @transform_5, window_bounds = array<i64: 1, 4, 256>}]} {
    %c16_i32 = arith.constant 16 : i32
    %0 = arith.muli %arg1, %c16_i32 : i32
    %1 = arith.index_cast %0 : i32 to index
    %c0 = arith.constant 0 : index
    %2 = vector.load %arg4[%1, %c0] : memref<16x8xf32, #tpu.memory_space<vmem>>, vector<16x8xf32>
    %c0_0 = arith.constant 0 : index
    %c0_1 = arith.constant 0 : index
    %c0_2 = arith.constant 0 : index
    %3 = vector.load %arg3[%c0_0, %c0_1, %c0_2] : memref<1x8x8xf32, #tpu.memory_space<vmem>>, vector<1x8x8xf32>
    %4 = vector.shape_cast %3 : vector<1x8x8xf32> to vector<8x8xf32>
    %cst = arith.constant dense<0.000000e+00> : vector<16x8xf32>
    %5 = tpu.matmul %2, %4, %cst {dimension_numbers = #tpu.dot_dimension_numbers<[1], [0], [0], [1], [0, 0, 1, 1], [], []>} : vector<16x8xf32>, vector<8x8xf32>, vector<16x8xf32> -> vector<16x8xf32>
    %c0_3 = arith.constant 0 : index
    %c0_4 = arith.constant 0 : index
    %6 = vector.load %arg5[%c0_3, %c0_4] : memref<8x256xf32, #tpu.memory_space<vmem>>, vector<8x256xf32>
    %cst_5 = arith.constant dense<0.000000e+00> : vector<16x256xf32>
    %7 = tpu.matmul %5, %6, %cst_5 {dimension_numbers = #tpu.dot_dimension_numbers<[1], [0], [0], [1], [0, 0, 1, 1], [], []>} : vector<16x8xf32>, vector<8x256xf32>, vector<16x256xf32> -> vector<16x256xf32>
    %c0_6 = arith.constant 0 : index
    %c0_7 = arith.constant 0 : index
    %8 = vector.load %arg6[%c0_6, %c0_7] : memref<16x256xf32, #tpu.memory_space<vmem>>, vector<16x256xf32>
    %9 = arith.mulf %7, %8 : vector<16x256xf32>
    %cst_8 = arith.constant dense<0.000000e+00> : vector<256xf32>
    %10 = vector.multi_reduction <add>, %9, %cst_8 [0] : vector<16x256xf32> to vector<256xf32>
    %11 = vector.shape_cast %10 : vector<256xf32> to vector<1x256xf32>
    %c0_9 = arith.constant 0 : index
    %c0_10 = arith.constant 0 : index
    %c0_11 = arith.constant 0 : index
    %12 = vector.load %arg2[%c0_9, %c0_10, %c0_11] : memref<1x4x256xf32, #tpu.memory_space<vmem>>, vector<1x4x256xf32>
    %13 = vector.shape_cast %12 : vector<1x4x256xf32> to vector<4x256xf32>
    %14 = vector.broadcast %11 : vector<1x256xf32> to vector<4x256xf32>
    %15 = arith.mulf %13, %14 : vector<4x256xf32>
    %c0_12 = arith.constant 0 : index
    %c0_13 = arith.constant 0 : index
    %c0_14 = arith.constant 0 : index
    %16 = vector.load %arg7[%c0_12, %c0_13, %c0_14] : memref<1x4x256xf32, #tpu.memory_space<vmem>>, vector<1x4x256xf32>
    %17 = vector.shape_cast %16 : vector<1x4x256xf32> to vector<4x256xf32>
    %18 = vector.shape_cast %15 : vector<4x256xf32> to vector<1x4x256xf32>
    tpu.vector_store %arg7[%c0_12, %c0_13, %c0_14], %18 {strides = array<i32>} : memref<1x4x256xf32, #tpu.memory_space<vmem>>, vector<1x4x256xf32>,
    return
  }
  func.func @transform_0(%arg0: i32, %arg1: i32) -> (i32, i32, i32) {
    %c0_i32 = arith.constant 0 : i32
    %c0_i32_0 = arith.constant 0 : i32
    return %arg0, %c0_i32, %arg1 : i32, i32, i32
  }
  func.func @transform_1(%arg0: i32, %arg1: i32) -> (i32, i32, i32) {
    %c0_i32 = arith.constant 0 : i32
    %c0_i32_0 = arith.constant 0 : i32
    %c0_i32_1 = arith.constant 0 : i32
    return %arg0, %c0_i32, %c0_i32_0 : i32, i32, i32
  }
  func.func @transform_2(%arg0: i32, %arg1: i32) -> (i32, i32) {
    %c0_i32 = arith.constant 0 : i32
    %c0_i32_0 = arith.constant 0 : i32
    %c0_i32_1 = arith.constant 0 : i32
    return %c0_i32, %c0_i32_0 : i32, i32
  }
  func.func @transform_3(%arg0: i32, %arg1: i32) -> (i32, i32) {
    %c0_i32 = arith.constant 0 : i32
    %c0_i32_0 = arith.constant 0 : i32
    %c0_i32_1 = arith.constant 0 : i32
    return %c0_i32, %c0_i32_0 : i32, i32
  }
  func.func @transform_4(%arg0: i32, %arg1: i32) -> (i32, i32) {
    %c0_i32 = arith.constant 0 : i32
    %c0_i32_0 = arith.constant 0 : i32
    %c0_i32_1 = arith.constant 0 : i32
    return %c0_i32, %c0_i32_0 : i32, i32
  }
  func.func @transform_5(%arg0: i32, %arg1: i32) -> (i32, i32, i32) {
    %c0_i32 = arith.constant 0 : i32
    %c0_i32_0 = arith.constant 0 : i32
    return %arg0, %c0_i32, %arg1 : i32, i32, i32
  }
}

</mosaic_0001>

<llo_original>
// kernel: csa2d_forward.3
$region0: #{csa2d_forward.3}
  #allocation0 [shape = 'u32[]', space=smem, size = 0x4, offset = 0x4, fixed_abs, tag = 'smem constant byte address 0x4 - core index']
  #allocation1 [shape = 'u32[144,128]{1,0:T(1,128)}', space=vmem, size = 0x12000, scoped, tag = 'internal scratch']
  #allocation2 [shape = 'f32[1,1]{1,0:T(1,128)S(6)}', space=smem, size = 0x200, scoped, tag = 'scoped memory for csa2d_forward.3']
  %s0 = inlined_call_operand.vmem [shape: bf16[2,6,384], index: 0, kind: input, shape index: {}]
  %s1 = inlined_call_operand.vmem [shape: f32[2,4,256], index: 1, kind: input, shape index: {}]
  %s2 = inlined_call_operand.vmem [shape: bf16[9,4,6], index: 2, kind: input, shape index: {}]
  %s3 = inlined_call_operand.vmem [shape: bf16[4,4], index: 3, kind: input, shape index: {}]
  %s4 = inlined_call_operand.vmem [shape: f32[4,1], index: 4, kind: input, shape index: {}]
  %s5 = inlined_call_operand.vmem [shape: f32[4,1], index: 5, kind: input, shape index: {}]
  %s6 = inlined_call_operand.vmem [shape: f32[2,256], index: 6, kind: input, shape index: {}]
  %s7 = inlined_call_operand.<no memory space> [shape: f32[1,1], index: 7, kind: input, shape index: {}]
  %s8 = inlined_call_operand.vmem [shape: f32[2,4,256], index: 8, kind: output, shape index: {}]
  %s9 = sld [smem:[#allocation0]]
  $region65: #{csa2d_forward.3} parent=0
    _
  %s11 = ssub.s32 1, %s9
  %s12 = scalar_select 0, %s11, %s9
  %13 = sst [smem:[#allocation2]] %s7
  loop: start=0, step=1, limit=4
  $region2: #{csa2d_forward.3} parent=0 // loop_pre_header
    _
  $region3: #{csa2d_forward.3} parent=0 // loop_header
    %s15 = sphi 0, %s19
    %p16 = scmp.ge.s32.totalorder %s15, 4
    %s25 = sphi 0, %s27
    %s28 = sphi 0, %s25
    %s29 = sphi 0, %s28
    %s45 = sphi 0, %s29
    %s51 = sphi 0, %s53
    %s54 = sphi 0, %s51
    %s55 = sphi 0, %s54
    %s71 = sphi 0, %s55
    %s75 = sphi 0, %s75
    %s77 = sphi 0, %s75
    %s78 = sphi 0, %s77
    %s92 = sphi 0, %s78
    %s96 = sphi 0, %s96
    %s98 = sphi 0, %s96
    %s99 = sphi 0, %s98
    %s113 = sphi 0, %s99
    %s117 = sphi 0, %s117
    %s119 = sphi 0, %s117
    %s120 = sphi 0, %s119
    %s134 = sphi 0, %s120
    %s138 = sphi 0, %s138
    %s140 = sphi 0, %s138
    %s141 = sphi 0, %s140
    %s155 = sphi 0, %s141
    %s159 = sphi 0, %s159
    %s161 = sphi 0, %s159
    %s162 = sphi 0, %s161
    %s176 = sphi 0, %s162
    %s180 = sphi 0, %s180
    %s182 = sphi 0, %s180
    %s183 = sphi 0, %s182
    %s197 = sphi 0, %s183
    %s203 = sphi 0, %s205
    %s206 = sphi 0, %s203
    %s207 = sphi 0, %s206
    %s223 = sphi 0, %s207
  $region4: #{csa2d_forward.3} parent=0 // loop_header_branch
    %18 = sbr.rel (%p16) target = $region8
  $region5: #{csa2d_forward.3} parent=0 // loop_body
    %s20 = ssub.s32 %s15, 1
    %s21 = ssub.s32 %s15, 2
    %s22 = sadd.s32 %s15, 1
    %s23 = ssub.s32 %s15, %s22
    %p24 = scmp.eq.s32.totalorder %s23, 0
    %s26 = sadd.s32 %s25, 1
    %s27 = scalar_select %p24, %s25, %s26
    %p30 = pneg %p24
    %p31 = scmp.eq.s32.totalorder %s15, 1
    %p32 = por %p30, %p31
    %p33 = scmp.ne.s32.totalorder %s25, %s28
    %p34 = scmp.eq.s32.totalorder %s15, 0
    %p35 = por %p33, %p34
    %p36 = scmp.ne.s32.totalorder %s25, %s28
    %p37 = scmp.eq.s32.totalorder %s20, 1
    %p38 = por %p36, %p37
    %p39 = scmp.ne.s32.totalorder %s28, %s29
    %p40 = scmp.eq.s32.totalorder %s20, 0
    %p41 = por %p39, %p40
    %p42 = scmp.ne.s32.totalorder %s28, %s29
    %p43 = scmp.eq.s32.totalorder %s21, 1
    %p44 = por %p42, %p43
    %p46 = scmp.ne.s32.totalorder %s29, %s45
    %p47 = scmp.eq.s32.totalorder %s21, 0
    %p48 = por %p46, %p47
    %s49 = ssub.s32 %s15, %s22
    %p50 = scmp.eq.s32.totalorder %s49, 0
    %s52 = sadd.s32 %s51, 1
    %s53 = scalar_select %p50, %s51, %s52
    %p56 = pneg %p50
    %p57 = scmp.eq.s32.totalorder %s15, 1
    %p58 = por %p56, %p57
    %p59 = scmp.ne.s32.totalorder %s51, %s54
    %p60 = scmp.eq.s32.totalorder %s15, 0
    %p61 = por %p59, %p60
    %p62 = scmp.ne.s32.totalorder %s51, %s54
    %p63 = scmp.eq.s32.totalorder %s20, 1
    %p64 = por %p62, %p63
    %p65 = scmp.ne.s32.totalorder %s54, %s55
    %p66 = scmp.eq.s32.totalorder %s20, 0
    %p67 = por %p65, %p66
    %p68 = scmp.ne.s32.totalorder %s54, %s55
    %p69 = scmp.eq.s32.totalorder %s21, 1
    %p70 = por %p68, %p69
    %p72 = scmp.ne.s32.totalorder %s55, %s71
    %p73 = scmp.eq.s32.totalorder %s21, 0
    %p74 = por %p72, %p73
    %s76 = sadd.s32 %s75, 1
    %p79 = scmp.eq.s32.totalorder %s15, 1
    %p80 = scmp.ne.s32.totalorder %s75, %s77
    %p81 = scmp.eq.s32.totalorder %s15, 0
    %p82 = por %p80, %p81
    %p83 = scmp.ne.s32.totalorder %s75, %s77
    %p84 = scmp.eq.s32.totalorder %s20, 1
    %p85 = por %p83, %p84
    %p86 = scmp.ne.s32.totalorder %s77, %s78
    %p87 = scmp.eq.s32.totalorder %s20, 0
    %p88 = por %p86, %p87
    %p89 = scmp.ne.s32.totalorder %s77, %s78
    %p90 = scmp.eq.s32.totalorder %s21, 1
    %p91 = por %p89, %p90
    %p93 = scmp.ne.s32.totalorder %s78, %s92
    %p94 = scmp.eq.s32.totalorder %s21, 0
    %p95 = por %p93, %p94
    %s97 = sadd.s32 %s96, 1
    %p100 = scmp.eq.s32.totalorder %s15, 1
    %p101 = scmp.ne.s32.totalorder %s96, %s98
    %p102 = scmp.eq.s32.totalorder %s15, 0
    %p103 = por %p101, %p102
    %p104 = scmp.ne.s32.totalorder %s96, %s98
    %p105 = scmp.eq.s32.totalorder %s20, 1
    %p106 = por %p104, %p105
    %p107 = scmp.ne.s32.totalorder %s98, %s99
    %p108 = scmp.eq.s32.totalorder %s20, 0
    %p109 = por %p107, %p108
    %p110 = scmp.ne.s32.totalorder %s98, %s99
    %p111 = scmp.eq.s32.totalorder %s21, 1
    %p112 = por %p110, %p111
    %p114 = scmp.ne.s32.totalorder %s99, %s113
    %p115 = scmp.eq.s32.totalorder %s21, 0
    %p116 = por %p114, %p115
    %s118 = sadd.s32 %s117, 1
    %p121 = scmp.eq.s32.totalorder %s15, 1
    %p122 = scmp.ne.s32.totalorder %s117, %s119
    %p123 = scmp.eq.s32.totalorder %s15, 0
    %p124 = por %p122, %p123
    %p125 = scmp.ne.s32.totalorder %s117, %s119
    %p126 = scmp.eq.s32.totalorder %s20, 1
    %p127 = por %p125, %p126
    %p128 = scmp.ne.s32.totalorder %s119, %s120
    %p129 = scmp.eq.s32.totalorder %s20, 0
    %p130 = por %p128, %p129
    %p131 = scmp.ne.s32.totalorder %s119, %s120
    %p132 = scmp.eq.s32.totalorder %s21, 1
    %p133 = por %p131, %p132
    %p135 = scmp.ne.s32.totalorder %s120, %s134
    %p136 = scmp.eq.s32.totalorder %s21, 0
    %p137 = por %p135, %p136
    %s139 = sadd.s32 %s138, 1
    %p142 = scmp.eq.s32.totalorder %s15, 1
    %p143 = scmp.ne.s32.totalorder %s138, %s140
    %p144 = scmp.eq.s32.totalorder %s15, 0
    %p145 = por %p143, %p144
    %p146 = scmp.ne.s32.totalorder %s138, %s140
    %p147 = scmp.eq.s32.totalorder %s20, 1
    %p148 = por %p146, %p147
    %p149 = scmp.ne.s32.totalorder %s140, %s141
    %p150 = scmp.eq.s32.totalorder %s20, 0
    %p151 = por %p149, %p150
    %p152 = scmp.ne.s32.totalorder %s140, %s141
    %p153 = scmp.eq.s32.totalorder %s21, 1
    %p154 = por %p152, %p153
    %p156 = scmp.ne.s32.totalorder %s141, %s155
    %p157 = scmp.eq.s32.totalorder %s21, 0
    %p158 = por %p156, %p157
    %s160 = sadd.s32 %s159, 1
    %p163 = scmp.eq.s32.totalorder %s15, 1
    %p164 = scmp.ne.s32.totalorder %s159, %s161
    %p165 = scmp.eq.s32.totalorder %s15, 0
    %p166 = por %p164, %p165
    %p167 = scmp.ne.s32.totalorder %s159, %s161
    %p168 = scmp.eq.s32.totalorder %s20, 1
    %p169 = por %p167, %p168
    %p170 = scmp.ne.s32.totalorder %s161, %s162
    %p171 = scmp.eq.s32.totalorder %s20, 0
    %p172 = por %p170, %p171
    %p173 = scmp.ne.s32.totalorder %s161, %s162
    %p174 = scmp.eq.s32.totalorder %s21, 1
    %p175 = por %p173, %p174
    %p177 = scmp.ne.s32.totalorder %s162, %s176
    %p178 = scmp.eq.s32.totalorder %s21, 0
    %p179 = por %p177, %p178
    %s181 = sadd.s32 %s180, 1
    %p184 = scmp.eq.s32.totalorder %s15, 1
    %p185 = scmp.ne.s32.totalorder %s180, %s182
    %p186 = scmp.eq.s32.totalorder %s15, 0
    %p187 = por %p185, %p186
    %p188 = scmp.ne.s32.totalorder %s180, %s182
    %p189 = scmp.eq.s32.totalorder %s20, 1
    %p190 = por %p188, %p189
    %p191 = scmp.ne.s32.totalorder %s182, %s183
    %p192 = scmp.eq.s32.totalorder %s20, 0
    %p193 = por %p191, %p192
    %p194 = scmp.ne.s32.totalorder %s182, %s183
    %p195 = scmp.eq.s32.totalorder %s21, 1
    %p196 = por %p194, %p195
    %p198 = scmp.ne.s32.totalorder %s183, %s197
    %p199 = scmp.eq.s32.totalorder %s21, 0
    %p200 = por %p198, %p199
    %s201 = ssub.s32 %s15, %s22
    %p202 = scmp.eq.s32.totalorder %s201, 0
    %s204 = sadd.s32 %s203, 1
    %s205 = scalar_select %p202, %s203, %s204
    %p208 = pneg %p202
    %p209 = scmp.eq.s32.totalorder %s15, 1
    %p210 = por %p208, %p209
    %p211 = scmp.ne.s32.totalorder %s203, %s206
    %p212 = scmp.eq.s32.totalorder %s15, 0
    %p213 = por %p211, %p212
    %p214 = scmp.ne.s32.totalorder %s203, %s206
    %p215 = scmp.eq.s32.totalorder %s20, 1
    %p216 = por %p214, %p215
    %p217 = scmp.ne.s32.totalorder %s206, %s207
    %p218 = scmp.eq.s32.totalorder %s20, 0
    %p219 = por %p217, %p218
    %p220 = scmp.ne.s32.totalorder %s206, %s207
    %p221 = scmp.eq.s32.totalorder %s21, 1
    %p222 = por %p220, %p221
    %p224 = scmp.ne.s32.totalorder %s207, %s223
    %p225 = scmp.eq.s32.totalorder %s21, 0
    %p226 = por %p224, %p225
    %p227 = scmp.le.s32.totalorder 1, %s15
    %p228 = scmp.lt.s32.totalorder %s15, 3
    %p229 = pnand %p227, %p228
    %p230 = pneg %p229
    // Predicated region
    $region9: #{csa2d_forward.3} parent=5 // pred_check
      _
    $region10: #{csa2d_forward.3} parent=5 // pred_check_branch
      %232 = sbr.rel (%p229) target = $region12
    $region11: #{csa2d_forward.3} parent=5 // pred_region
      %s233 = ssub.s32 %s15, 1
      // Predicated region
      $region13: #{csa2d_forward.3} parent=11 // pred_check
        %p234 = pneg %p88
      $region14: #{csa2d_forward.3} parent=11 // pred_check_branch
        %236 = sbr.rel (%p234) target = $region16
      $region15: #{csa2d_forward.3} parent=11 // pred_region
        _
      $region16: #{csa2d_forward.3} parent=11 // pred_fallthru
        _
      // Predicated region
      $region17: #{csa2d_forward.3} parent=11 // pred_check
        %p237 = pneg %p109
      $region18: #{csa2d_forward.3} parent=11 // pred_check_branch
        %239 = sbr.rel (%p237) target = $region20
      $region19: #{csa2d_forward.3} parent=11 // pred_region
        _
      $region20: #{csa2d_forward.3} parent=11 // pred_fallthru
        _
      // Predicated region
      $region21: #{csa2d_forward.3} parent=11 // pred_check
        %p240 = pneg %p130
      $region22: #{csa2d_forward.3} parent=11 // pred_check_branch
        %242 = sbr.rel (%p240) target = $region24
      $region23: #{csa2d_forward.3} parent=11 // pred_region
        _
      $region24: #{csa2d_forward.3} parent=11 // pred_fallthru
        _
      // Predicated region
      $region25: #{csa2d_forward.3} parent=11 // pred_check
        %p243 = pneg %p151
      $region26: #{csa2d_forward.3} parent=11 // pred_check_branch
        %245 = sbr.rel (%p243) target = $region28
      $region27: #{csa2d_forward.3} parent=11 // pred_region
        _
      $region28: #{csa2d_forward.3} parent=11 // pred_fallthru
        _
      // Predicated region
      $region29: #{csa2d_forward.3} parent=11 // pred_check
        %p246 = pneg %p172
      $region30: #{csa2d_forward.3} parent=11 // pred_check_branch
        %248 = sbr.rel (%p246) target = $region32
      $region31: #{csa2d_forward.3} parent=11 // pred_region
        _
      $region32: #{csa2d_forward.3} parent=11 // pred_fallthru
        _
      // Predicated region
      $region33: #{csa2d_forward.3} parent=11 // pred_check
        %p249 = pneg %p193
      $region34: #{csa2d_forward.3} parent=11 // pred_check_branch
        %251 = sbr.rel (%p249) target = $region36
      $region35: #{csa2d_forward.3} parent=11 // pred_region
        _
      $region36: #{csa2d_forward.3} parent=11 // pred_fallthru
        _
    $region12: #{csa2d_forward.3} parent=5 // pred_fallthru
      _
    %p252 = scmp.lt.s32.totalorder %s15, 2
    // Predicated region
    $region37: #{csa2d_forward.3} parent=5 // pred_check
      %p253 = pneg %p252
    $region38: #{csa2d_forward.3} parent=5 // pred_check_branch
      %255 = sbr.rel (%p253) target = $region40
    $region39: #{csa2d_forward.3} parent=5 // pred_region
      // Predicated region
      $region41: #{csa2d_forward.3} parent=39 // pred_check
        %p256 = pneg %p35
      $region42: #{csa2d_forward.3} parent=39 // pred_check_branch
        %258 = sbr.rel (%p256) target = $region44
      $region43: #{csa2d_forward.3} parent=39 // pred_region
        %p259 = scmp.lt.s32.totalorder %s15, 1
        %s260 = scalar_select %p259, %s15, 1
        %s261 = smul.addr %s260, 3
        %s262 = smul.addr %s261, 4
        %s263 = scalar_lea.vmem %s0, %s262
      $region44: #{csa2d_forward.3} parent=39 // pred_fallthru
        _
      // Predicated region
      $region45: #{csa2d_forward.3} parent=39 // pred_check
        %p264 = pneg %p61
      $region46: #{csa2d_forward.3} parent=39 // pred_check_branch
        %266 = sbr.rel (%p264) target = $region48
      $region47: #{csa2d_forward.3} parent=39 // pred_region
        %p267 = scmp.lt.s32.totalorder %s15, 1
        %s268 = scalar_select %p267, %s15, 1
        %s269 = smul.addr %s268, 2
        %s270 = smul.addr %s269, 4
        %s271 = scalar_lea.vmem %s1, %s270
      $region48: #{csa2d_forward.3} parent=39 // pred_fallthru
        _
    $region40: #{csa2d_forward.3} parent=5 // pred_fallthru
      _
    %p272 = scmp.le.s32.totalorder 1, %s15
    %p273 = scmp.lt.s32.totalorder %s15, 3
    %p274 = pnand %p272, %p273
    %p275 = pneg %p274
    // Predicated region
    $region49: #{csa2d_forward.3} parent=5 // pred_check
      _
    $region50: #{csa2d_forward.3} parent=5 // pred_check_branch
      %277 = sbr.rel (%p274) target = $region52
    $region51: #{csa2d_forward.3} parent=5 // pred_region
      %s278 = ssub.s32 %s15, 1
      %p279 = scmp.lt.s32.totalorder %s20, 1
      %s280 = scalar_select %p279, %s20, 1
      %s281 = smul.addr %s280, 3
      %s282 = smul.addr %s281, 4
      %s283 = scalar_lea.vmem %s0, %s282
      %p284 = pneg %p41
      %p285 = pneg %p38
      %p286 = scmp.lt.s32.totalorder %s20, 1
      %s287 = scalar_select %p286, %s20, 1
      %s288 = smul.addr %s287, 2
      %s289 = smul.addr %s288, 4
      %s290 = scalar_lea.vmem %s1, %s289
      %p291 = pneg %p67
      %p292 = pneg %p64
      %p293 = pneg %p88
      %p294 = pneg %p85
      %p295 = pneg %p109
      %p296 = pneg %p106
      %p297 = pneg %p130
      %p298 = pneg %p127
      %p299 = pneg %p151
      %p300 = pneg %p148
      %p301 = pneg %p172
      %p302 = pneg %p169
      %p303 = pneg %p193
      %p304 = pneg %p190
      %p305 = pneg %p219
      %p306 = pneg %p216
      %p307 = scmp.lt.s32.totalorder %s20, 1
      %s308 = scalar_select %p307, %s20, 1
      %s309 = smul.addr %s308, 2
      %s310 = smul.addr %s309, 4
      %s311 = scalar_lea.vmem %s8, %s310
      %p312 = scmp.lt.s32.totalorder %s20, 1
      %s313 = scalar_select %p312, %s20, 1
      %s314 = smul.addr %s313, 3
      %s315 = smul.addr %s314, 4
      %s316 = scalar_lea.vmem %s0, %s315
      %p317 = scmp.lt.s32.totalorder %s20, 1
      %s318 = scalar_select %p317, %s20, 1
      %s319 = smul.addr %s318, 2
      %s320 = smul.addr %s319, 4
      %s321 = scalar_lea.vmem %s1, %s320
      %p322 = scmp.lt.s32.totalorder %s20, 1
      %s323 = scalar_select %p322, %s20, 1
      %s324 = smul.addr %s323, 2
      %s325 = smul.addr %s324, 4
      %s326 = scalar_lea.vmem %s8, %s325
      %v328 = vld [vmem:[%s321] sm:$0xff]
      %v329 = vld [vmem:[%s3] sm:$0x3]
      %v331 = vcombine.high %v328, %v328
      %v333 = vpack.c.bf16 %v328, %v328
      %v334 = vpack.c.bf16 %v331, %v331
      %v335 = vld [vmem:[%s316] sm:$0x77]
      %v336 = vld [vmem:[%s316 + $0x8] sm:$0x7]
      %v337 = vld [vmem:[%s2] sm:$0x3]
      %v339 = vunpack.c.l.b16 %v335
      %v340 = vunpack.c.h.b16 %v335
      %v341 = vpack.c.b16 %v339, %v339
      %v342 = vpack.c.b16 %v340, %v340
      %vm343 = vcmask 48128
      %v345 = vsel %vm343, %v337, 0
      %vm347 = vcmask 1042432
      %v349 = vsel %vm347, %v341, 0
      %v352 = vsel %vm347, %v342, 0
      %354 = vmatprep.subr.bf16.mxu0 %v352
      %355 = vmatpush1.bf16.msra.mxu0 %v349
      %356 = vmatprep.subr.bf16.mxu0 0
      %357 = vmatpush1.bf16.msra.mxu0 0
      %358 = vmatprep.subr.bf16.mxu0 0
      %359 = vmatpush1.bf16.msra.mxu0 0
      %360 = vmatprep.subr.bf16.mxu0 0
      %361 = vmatpush1.bf16.msra.mxu0 0
      %362 = vmatprep.subr.bf16.mxu0 0
      %363 = vmatpush1.bf16.msra.mxu0 0
      %364 = vmatprep.subr.bf16.mxu0 0
      %365 = vmatpush1.bf16.msra.mxu0 0
      %366 = vmatprep.subr.bf16.mxu0 0
      %367 = vmatpush1.bf16.msra.mxu0 0
      %368 = vmatprep.subr.bf16.mxu0 0
      %369 = vmatpush1.bf16.msra.mxu0 0
      %370 = vmatprep.subr.bf16.mxu0 0
      %371 = vmatpush1.bf16.msra.mxu0 0
      %372 = vmatprep.subr.bf16.mxu0 0
      %373 = vmatpush1.bf16.msra.mxu0 0
      %374 = vmatprep.subr.bf16.mxu0 0
      %375 = vmatpush1.bf16.msra.mxu0 0
      %376 = vmatprep.subr.bf16.mxu0 0
      %377 = vmatpush1.bf16.msra.mxu0 0
      %378 = vmatprep.subr.bf16.mxu0 0
      %379 = vmatpush1.bf16.msra.mxu0 0
      %380 = vmatprep.subr.bf16.mxu0 0
      %381 = vmatpush1.bf16.msra.mxu0 0
      %382 = vmatprep.subr.bf16.mxu0 0
      %383 = vmatpush1.bf16.msra.mxu0 0
      %384 = vmatprep.subr.bf16.mxu0 0
      %385 = vmatpush1.bf16.msra.mxu0 0
      %386 = vmatprep.mubr.bf16.mxu0 0
      %387 = vmatmul.mubr.bf16.gmra.mrb[0].mxu0 %v345
      %v388 = vpop.f32.mrb[0].mxu0
      %v389 = vadd.f32 0.0, %v388
      %v390 = vpop.f32.mrb[0].mxu0
      %v391 = vadd.f32 0.0, %v390
      %v392 = vpop.f32.mrb[0].mxu0
      %v393 = vpop.f32.mrb[0].mxu0
      %394 = vdwg.mxu0
      %v395 = vld [vmem:[%s6] ss:$2 sm:$0x3]
      %v397 = vlaneseq
      %v398 = vshrl.u32 %v397, 7
      %v399 = vsub.s32 0, %v398
      %v400 = vrot.slane %v395, %v399
      %v401 = vlaneseq
      %v402 = vshrl.u32 %v401, 7
      %v403 = vsub.s32 1, %v402
      %v404 = vrot.slane %v395, %v403
      %v407 = vmul.f32 %v389, %v400
      %v408 = vmul.f32 %v391, %v404
      %vm409 = vcmask 31744
      %v411 = vsel %vm409, %v329, 0
      %vm413 = vcmask 1041408
      %v415 = vsel %vm413, %v333, 0
      %v418 = vsel %vm413, %v334, 0
      %420 = vmatprep.subr.bf16.mxu0 %v418
      %421 = vmatpush1.bf16.msra.mxu0 %v415
      %422 = vmatprep.subr.bf16.mxu0 0
      %423 = vmatpush1.bf16.msra.mxu0 0
      %424 = vmatprep.subr.bf16.mxu0 0
      %425 = vmatpush1.bf16.msra.mxu0 0
      %426 = vmatprep.subr.bf16.mxu0 0
      %427 = vmatpush1.bf16.msra.mxu0 0
      %428 = vmatprep.subr.bf16.mxu0 0
      %429 = vmatpush1.bf16.msra.mxu0 0
      %430 = vmatprep.subr.bf16.mxu0 0
      %431 = vmatpush1.bf16.msra.mxu0 0
      %432 = vmatprep.subr.bf16.mxu0 0
      %433 = vmatpush1.bf16.msra.mxu0 0
      %434 = vmatprep.subr.bf16.mxu0 0
      %435 = vmatpush1.bf16.msra.mxu0 0
      %436 = vmatprep.subr.bf16.mxu0 0
      %437 = vmatpush1.bf16.msra.mxu0 0
      %438 = vmatprep.subr.bf16.mxu0 0
      %439 = vmatpush1.bf16.msra.mxu0 0
      %440 = vmatprep.subr.bf16.mxu0 0
      %441 = vmatpush1.bf16.msra.mxu0 0
      %442 = vmatprep.subr.bf16.mxu0 0
      %443 = vmatpush1.bf16.msra.mxu0 0
      %444 = vmatprep.subr.bf16.mxu0 0
      %445 = vmatpush1.bf16.msra.mxu0 0
      %446 = vmatprep.subr.bf16.mxu0 0
      %447 = vmatpush1.bf16.msra.mxu0 0
      %448 = vmatprep.subr.bf16.mxu0 0
      %449 = vmatpush1.bf16.msra.mxu0 0
      %450 = vmatprep.subr.bf16.mxu0 0
      %451 = vmatpush1.bf16.msra.mxu0 0
      %452 = vmatprep.mubr.bf16.mxu0 0
      %453 = vmatmul.mubr.bf16.gmra.mrb[0].mxu0 %v411
      %v454 = vpop.f32.mrb[0].mxu0
      %v455 = vadd.f32 %v407, %v454
      %v456 = vpop.f32.mrb[0].mxu0
      %v457 = vadd.f32 %v408, %v456
      %v458 = vpop.f32.mrb[0].mxu0
      %v459 = vpop.f32.mrb[0].mxu0
      %460 = vdwg.mxu0
      %s461 = scalar_lea.vmem %s2, 2
      %v462 = vld [vmem:[%s461] sm:$0x3]
      %v464 = vunpack.c.l.b16 %v336
      %v465 = vpack.c.b16 %v464, %v464
      %466 = vrot.lane.b32.xlu0 %v341, 127
      %v467 = vpop.permute.xlu0 %466
      %468 = vrot.lane.b32.xlu0 %v342, 127
      %v469 = vpop.permute.xlu0 %468
      %470 = vrot.lane.b32.xlu0 %v465, 127
      %v471 = vpop.permute.xlu0 %470
      %vm472 = vcmask 1039360
      %v473 = vsel %vm472, %v467, %v469
      %v474 = vsel %vm472, %v469, %v471
      %v476 = vsel %vm343, %v462, 0
      %v479 = vsel %vm347, %v473, 0
      %v482 = vsel %vm347, %v474, 0
      %484 = vmatprep.subr.bf16.mxu0 %v482
      %485 = vmatpush1.bf16.msra.mxu0 %v479
      %486 = vmatprep.subr.bf16.mxu0 0
      %487 = vmatpush1.bf16.msra.mxu0 0
      %488 = vmatprep.subr.bf16.mxu0 0
      %489 = vmatpush1.bf16.msra.mxu0 0
      %490 = vmatprep.subr.bf16.mxu0 0
      %491 = vmatpush1.bf16.msra.mxu0 0
      %492 = vmatprep.subr.bf16.mxu0 0
      %493 = vmatpush1.bf16.msra.mxu0 0
      %494 = vmatprep.subr.bf16.mxu0 0
      %495 = vmatpush1.bf16.msra.mxu0 0
      %496 = vmatprep.subr.bf16.mxu0 0
      %497 = vmatpush1.bf16.msra.mxu0 0
      %498 = vmatprep.subr.bf16.mxu0 0
      %499 = vmatpush1.bf16.msra.mxu0 0
      %500 = vmatprep.subr.bf16.mxu0 0
      %501 = vmatpush1.bf16.msra.mxu0 0
      %502 = vmatprep.subr.bf16.mxu0 0
      %503 = vmatpush1.bf16.msra.mxu0 0
      %504 = vmatprep.subr.bf16.mxu0 0
      %505 = vmatpush1.bf16.msra.mxu0 0
      %506 = vmatprep.subr.bf16.mxu0 0
      %507 = vmatpush1.bf16.msra.mxu0 0
      %508 = vmatprep.subr.bf16.mxu0 0
      %509 = vmatpush1.bf16.msra.mxu0 0
      %510 = vmatprep.subr.bf16.mxu0 0
      %511 = vmatpush1.bf16.msra.mxu0 0
      %512 = vmatprep.subr.bf16.mxu0 0
      %513 = vmatpush1.bf16.msra.mxu0 0
      %514 = vmatprep.subr.bf16.mxu0 0
      %515 = vmatpush1.bf16.msra.mxu0 0
      %516 = vmatprep.mubr.bf16.mxu0 0
      %517 = vmatmul.mubr.bf16.gmra.mrb[0].mxu0 %v476
      %v518 = vpop.f32.mrb[0].mxu0
      %v519 = vadd.f32 0.0, %v518
      %v520 = vpop.f32.mrb[0].mxu0
      %v521 = vadd.f32 0.0, %v520
      %v522 = vpop.f32.mrb[0].mxu0
      %v523 = vpop.f32.mrb[0].mxu0
      %524 = vdwg.mxu0
      %v525 = vadd.f32 %v455, %v519
      %v526 = vadd.f32 %v457, %v521
      %s527 = scalar_lea.vmem %s2, 4
      %v528 = vld [vmem:[%s527] sm:$0x3]
      %529 = vrot.lane.b32.xlu0 %v341, 126
      %v530 = vpop.permute.xlu0 %529
      %531 = vrot.lane.b32.xlu0 %v342, 126
      %v532 = vpop.permute.xlu0 %531
      %533 = vrot.lane.b32.xlu0 %v465, 126
      %v534 = vpop.permute.xlu0 %533
      %vm535 = vcmask 1031168
      %v536 = vsel %vm535, %v530, %v532
      %v537 = vsel %vm535, %v532, %v534
      %v539 = vsel %vm343, %v528, 0
      %v542 = vsel %vm347, %v536, 0
      %v545 = vsel %vm347, %v537, 0
      %547 = vmatprep.subr.bf16.mxu0 %v545
      %548 = vmatpush1.bf16.msra.mxu0 %v542
      %549 = vmatprep.subr.bf16.mxu0 0
      %550 = vmatpush1.bf16.msra.mxu0 0
      %551 = vmatprep.subr.bf16.mxu0 0
      %552 = vmatpush1.bf16.msra.mxu0 0
      %553 = vmatprep.subr.bf16.mxu0 0
      %554 = vmatpush1.bf16.msra.mxu0 0
      %555 = vmatprep.subr.bf16.mxu0 0
      %556 = vmatpush1.bf16.msra.mxu0 0
      %557 = vmatprep.subr.bf16.mxu0 0
      %558 = vmatpush1.bf16.msra.mxu0 0
      %559 = vmatprep.subr.bf16.mxu0 0
      %560 = vmatpush1.bf16.msra.mxu0 0
      %561 = vmatprep.subr.bf16.mxu0 0
      %562 = vmatpush1.bf16.msra.mxu0 0
      %563 = vmatprep.subr.bf16.mxu0 0
      %564 = vmatpush1.bf16.msra.mxu0 0
      %565 = vmatprep.subr.bf16.mxu0 0
      %566 = vmatpush1.bf16.msra.mxu0 0
      %567 = vmatprep.subr.bf16.mxu0 0
      %568 = vmatpush1.bf16.msra.mxu0 0
      %569 = vmatprep.subr.bf16.mxu0 0
      %570 = vmatpush1.bf16.msra.mxu0 0
      %571 = vmatprep.subr.bf16.mxu0 0
      %572 = vmatpush1.bf16.msra.mxu0 0
      %573 = vmatprep.subr.bf16.mxu0 0
      %574 = vmatpush1.bf16.msra.mxu0 0
      %575 = vmatprep.subr.bf16.mxu0 0
      %576 = vmatpush1.bf16.msra.mxu0 0
      %577 = vmatprep.subr.bf16.mxu0 0
      %578 = vmatpush1.bf16.msra.mxu0 0
      %579 = vmatprep.mubr.bf16.mxu0 0
      %580 = vmatmul.mubr.bf16.gmra.mrb[0].mxu0 %v539
      %v581 = vpop.f32.mrb[0].mxu0
      %v582 = vadd.f32 0.0, %v581
      %v583 = vpop.f32.mrb[0].mxu0
      %v584 = vadd.f32 0.0, %v583
      %v585 = vpop.f32.mrb[0].mxu0
      %v586 = vpop.f32.mrb[0].mxu0
      %587 = vdwg.mxu0
      %s588 = scalar_lea.vmem %s6, 1
      %v589 = vld [vmem:[%s588] ss:$2 sm:$0x3]
      %v591 = vlaneseq
      %v592 = vshrl.u32 %v591, 7
      %v593 = vsub.s32 0, %v592
      %v594 = vrot.slane %v589, %v593
      %v595 = vlaneseq
      %v596 = vshrl.u32 %v595, 7
      %v597 = vsub.s32 1, %v596
      %v598 = vrot.slane %v589, %v597
      %v601 = vmul.f32 %v582, %v594
      %v602 = vmul.f32 %v584, %v598
      %v603 = vadd.f32 %v525, %v601
      %v604 = vadd.f32 %v526, %v602
      %s605 = scalar_lea.vmem %s2, 6
      %v606 = vld [vmem:[%s605] sm:$0x3]
      %607 = vrot.lane.b32.xlu0 %v341, 112
      %v608 = vpop.permute.xlu0 %607
      %609 = vrot.lane.b32.xlu0 %v342, 112
      %v610 = vpop.permute.xlu0 %609
      %611 = vrot.lane.b32.xlu0 %v465, 112
      %v612 = vpop.permute.xlu0 %611
      %vm613 = vcmask 916480
      %v614 = vsel %vm613, %v608, %v610
      %v615 = vsel %vm613, %v610, %v612
      %v617 = vsel %vm343, %v606, 0
      %v620 = vsel %vm347, %v614, 0
      %v623 = vsel %vm347, %v615, 0
      %625 = vmatprep.subr.bf16.mxu0 %v623
      %626 = vmatpush1.bf16.msra.mxu0 %v620
      %627 = vmatprep.subr.bf16.mxu0 0
      %628 = vmatpush1.bf16.msra.mxu0 0
      %629 = vmatprep.subr.bf16.mxu0 0
      %630 = vmatpush1.bf16.msra.mxu0 0
      %631 = vmatprep.subr.bf16.mxu0 0
      %632 = vmatpush1.bf16.msra.mxu0 0
      %633 = vmatprep.subr.bf16.mxu0 0
      %634 = vmatpush1.bf16.msra.mxu0 0
      %635 = vmatprep.subr.bf16.mxu0 0
      %636 = vmatpush1.bf16.msra.mxu0 0
      %637 = vmatprep.subr.bf16.mxu0 0
      %638 = vmatpush1.bf16.msra.mxu0 0
      %639 = vmatprep.subr.bf16.mxu0 0
      %640 = vmatpush1.bf16.msra.mxu0 0
      %641 = vmatprep.subr.bf16.mxu0 0
      %642 = vmatpush1.bf16.msra.mxu0 0
      %643 = vmatprep.subr.bf16.mxu0 0
      %644 = vmatpush1.bf16.msra.mxu0 0
      %645 = vmatprep.subr.bf16.mxu0 0
      %646 = vmatpush1.bf16.msra.mxu0 0
      %647 = vmatprep.subr.bf16.mxu0 0
      %648 = vmatpush1.bf16.msra.mxu0 0
      %649 = vmatprep.subr.bf16.mxu0 0
      %650 = vmatpush1.bf16.msra.mxu0 0
      %651 = vmatprep.subr.bf16.mxu0 0
      %652 = vmatpush1.bf16.msra.mxu0 0
      %653 = vmatprep.subr.bf16.mxu0 0
      %654 = vmatpush1.bf16.msra.mxu0 0
      %655 = vmatprep.subr.bf16.mxu0 0
      %656 = vmatpush1.bf16.msra.mxu0 0
      %657 = vmatprep.mubr.bf16.mxu0 0
      %658 = vmatmul.mubr.bf16.gmra.mrb[0].mxu0 %v617
      %v659 = vpop.f32.mrb[0].mxu0
      %v660 = vadd.f32 0.0, %v659
      %v661 = vpop.f32.mrb[0].mxu0
      %v662 = vadd.f32 0.0, %v661
      %v663 = vpop.f32.mrb[0].mxu0
      %v664 = vpop.f32.mrb[0].mxu0
      %665 = vdwg.mxu0
      %v666 = vmul.f32 %v660, %v400
      %v667 = vmul.f32 %v662, %v404
      %v668 = vadd.f32 %v603, %v666
      %v669 = vadd.f32 %v604, %v667
      %s670 = scalar_lea.vmem %s2, 8
      %v671 = vld [vmem:[%s670] sm:$0x3]
      %672 = vrot.lane.b32.xlu0 %v341, 111
      %v673 = vpop.permute.xlu0 %672
      %674 = vrot.lane.b32.xlu0 %v342, 111
      %v675 = vpop.permute.xlu0 %674
      %676 = vrot.lane.b32.xlu0 %v465, 111
      %v677 = vpop.permute.xlu0 %676
      %vm678 = vcmask 908288
      %v679 = vsel %vm678, %v673, %v675
      %v680 = vsel %vm678, %v675, %v677
      %v682 = vsel %vm343, %v671, 0
      %v685 = vsel %vm347, %v679, 0
      %v688 = vsel %vm347, %v680, 0
      %690 = vmatprep.subr.bf16.mxu0 %v688
      %691 = vmatpush1.bf16.msra.mxu0 %v685
      %692 = vmatprep.subr.bf16.mxu0 0
      %693 = vmatpush1.bf16.msra.mxu0 0
      %694 = vmatprep.subr.bf16.mxu0 0
      %695 = vmatpush1.bf16.msra.mxu0 0
      %696 = vmatprep.subr.bf16.mxu0 0
      %697 = vmatpush1.bf16.msra.mxu0 0
      %698 = vmatprep.subr.bf16.mxu0 0
      %699 = vmatpush1.bf16.msra.mxu0 0
      %700 = vmatprep.subr.bf16.mxu0 0
      %701 = vmatpush1.bf16.msra.mxu0 0
      %702 = vmatprep.subr.bf16.mxu0 0
      %703 = vmatpush1.bf16.msra.mxu0 0
      %704 = vmatprep.subr.bf16.mxu0 0
      %705 = vmatpush1.bf16.msra.mxu0 0
      %706 = vmatprep.subr.bf16.mxu0 0
      %707 = vmatpush1.bf16.msra.mxu0 0
      %708 = vmatprep.subr.bf16.mxu0 0
      %709 = vmatpush1.bf16.msra.mxu0 0
      %710 = vmatprep.subr.bf16.mxu0 0
      %711 = vmatpush1.bf16.msra.mxu0 0
      %712 = vmatprep.subr.bf16.mxu0 0
      %713 = vmatpush1.bf16.msra.mxu0 0
      %714 = vmatprep.subr.bf16.mxu0 0
      %715 = vmatpush1.bf16.msra.mxu0 0
      %716 = vmatprep.subr.bf16.mxu0 0
      %717 = vmatpush1.bf16.msra.mxu0 0
      %718 = vmatprep.subr.bf16.mxu0 0
      %719 = vmatpush1.bf16.msra.mxu0 0
      %720 = vmatprep.subr.bf16.mxu0 0
      %721 = vmatpush1.bf16.msra.mxu0 0
      %722 = vmatprep.mubr.bf16.mxu0 0
      %723 = vmatmul.mubr.bf16.gmra.mrb[0].mxu0 %v682
      %v724 = vpop.f32.mrb[0].mxu0
      %v725 = vadd.f32 0.0, %v724
      %v726 = vpop.f32.mrb[0].mxu0
      %v727 = vadd.f32 0.0, %v726
      %v728 = vpop.f32.mrb[0].mxu0
      %v729 = vpop.f32.mrb[0].mxu0
      %730 = vdwg.mxu0
      %v731 = vadd.f32 %v668, %v725
      %v732 = vadd.f32 %v669, %v727
      %s733 = scalar_lea.vmem %s2, 10
      %v734 = vld [vmem:[%s733] sm:$0x3]
      %735 = vrot.lane.b32.xlu0 %v341, 110
      %v736 = vpop.permute.xlu0 %735
      %737 = vrot.lane.b32.xlu0 %v342, 110
      %v738 = vpop.permute.xlu0 %737
      %739 = vrot.lane.b32.xlu0 %v465, 110
      %v740 = vpop.permute.xlu0 %739
      %vm741 = vcmask 900096
      %v742 = vsel %vm741, %v736, %v738
      %v743 = vsel %vm741, %v738, %v740
      %v745 = vsel %vm343, %v734, 0
      %v748 = vsel %vm347, %v742, 0
      %v751 = vsel %vm347, %v743, 0
      %753 = vmatprep.subr.bf16.mxu0 %v751
      %754 = vmatpush1.bf16.msra.mxu0 %v748
      %755 = vmatprep.subr.bf16.mxu0 0
      %756 = vmatpush1.bf16.msra.mxu0 0
      %757 = vmatprep.subr.bf16.mxu0 0
      %758 = vmatpush1.bf16.msra.mxu0 0
      %759 = vmatprep.subr.bf16.mxu0 0
      %760 = vmatpush1.bf16.msra.mxu0 0
      %761 = vmatprep.subr.bf16.mxu0 0
      %762 = vmatpush1.bf16.msra.mxu0 0
      %763 = vmatprep.subr.bf16.mxu0 0
      %764 = vmatpush1.bf16.msra.mxu0 0
      %765 = vmatprep.subr.bf16.mxu0 0
      %766 = vmatpush1.bf16.msra.mxu0 0
      %767 = vmatprep.subr.bf16.mxu0 0
      %768 = vmatpush1.bf16.msra.mxu0 0
      %769 = vmatprep.subr.bf16.mxu0 0
      %770 = vmatpush1.bf16.msra.mxu0 0
      %771 = vmatprep.subr.bf16.mxu0 0
      %772 = vmatpush1.bf16.msra.mxu0 0
      %773 = vmatprep.subr.bf16.mxu0 0
      %774 = vmatpush1.bf16.msra.mxu0 0
      %775 = vmatprep.subr.bf16.mxu0 0
      %776 = vmatpush1.bf16.msra.mxu0 0
      %777 = vmatprep.subr.bf16.mxu0 0
      %778 = vmatpush1.bf16.msra.mxu0 0
      %779 = vmatprep.subr.bf16.mxu0 0
      %780 = vmatpush1.bf16.msra.mxu0 0
      %781 = vmatprep.subr.bf16.mxu0 0
      %782 = vmatpush1.bf16.msra.mxu0 0
      %783 = vmatprep.subr.bf16.mxu0 0
      %784 = vmatpush1.bf16.msra.mxu0 0
      %785 = vmatprep.mubr.bf16.mxu0 0
      %786 = vmatmul.mubr.bf16.gmra.mrb[0].mxu0 %v745
      %v787 = vpop.f32.mrb[0].mxu0
      %v788 = vadd.f32 0.0, %v787
      %v789 = vpop.f32.mrb[0].mxu0
      %v790 = vadd.f32 0.0, %v789
      %v791 = vpop.f32.mrb[0].mxu0
      %v792 = vpop.f32.mrb[0].mxu0
      %793 = vdwg.mxu0
      %v794 = vmul.f32 %v788, %v594
      %v795 = vmul.f32 %v790, %v598
      %v796 = vadd.f32 %v731, %v794
      %v797 = vadd.f32 %v732, %v795
      %s798 = scalar_lea.vmem %s2, 12
      %v799 = vld [vmem:[%s798] sm:$0x3]
      %800 = vrot.lane.b32.xlu0 %v341, 96
      %v801 = vpop.permute.xlu0 %800
      %802 = vrot.lane.b32.xlu0 %v342, 96
      %v803 = vpop.permute.xlu0 %802
      %804 = vrot.lane.b32.xlu0 %v465, 96
      %v805 = vpop.permute.xlu0 %804
      %vm806 = vcmask 785408
      %v807 = vsel %vm806, %v801, %v803
      %v808 = vsel %vm806, %v803, %v805
      %v810 = vsel %vm343, %v799, 0
      %v813 = vsel %vm347, %v807, 0
      %v816 = vsel %vm347, %v808, 0
      %818 = vmatprep.subr.bf16.mxu0 %v816
      %819 = vmatpush1.bf16.msra.mxu0 %v813
      %820 = vmatprep.subr.bf16.mxu0 0
      %821 = vmatpush1.bf16.msra.mxu0 0
      %822 = vmatprep.subr.bf16.mxu0 0
      %823 = vmatpush1.bf16.msra.mxu0 0
      %824 = vmatprep.subr.bf16.mxu0 0
      %825 = vmatpush1.bf16.msra.mxu0 0
      %826 = vmatprep.subr.bf16.mxu0 0
      %827 = vmatpush1.bf16.msra.mxu0 0
      %828 = vmatprep.subr.bf16.mxu0 0
      %829 = vmatpush1.bf16.msra.mxu0 0
      %830 = vmatprep.subr.bf16.mxu0 0
      %831 = vmatpush1.bf16.msra.mxu0 0
      %832 = vmatprep.subr.bf16.mxu0 0
      %833 = vmatpush1.bf16.msra.mxu0 0
      %834 = vmatprep.subr.bf16.mxu0 0
      %835 = vmatpush1.bf16.msra.mxu0 0
      %836 = vmatprep.subr.bf16.mxu0 0
      %837 = vmatpush1.bf16.msra.mxu0 0
      %838 = vmatprep.subr.bf16.mxu0 0
      %839 = vmatpush1.bf16.msra.mxu0 0
      %840 = vmatprep.subr.bf16.mxu0 0
      %841 = vmatpush1.bf16.msra.mxu0 0
      %842 = vmatprep.subr.bf16.mxu0 0
      %843 = vmatpush1.bf16.msra.mxu0 0
      %844 = vmatprep.subr.bf16.mxu0 0
      %845 = vmatpush1.bf16.msra.mxu0 0
      %846 = vmatprep.subr.bf16.mxu0 0
      %847 = vmatpush1.bf16.msra.mxu0 0
      %848 = vmatprep.subr.bf16.mxu0 0
      %849 = vmatpush1.bf16.msra.mxu0 0
      %850 = vmatprep.mubr.bf16.mxu0 0
      %851 = vmatmul.mubr.bf16.gmra.mrb[0].mxu0 %v810
      %v852 = vpop.f32.mrb[0].mxu0
      %v853 = vadd.f32 0.0, %v852
      %v854 = vpop.f32.mrb[0].mxu0
      %v855 = vadd.f32 0.0, %v854
      %v856 = vpop.f32.mrb[0].mxu0
      %v857 = vpop.f32.mrb[0].mxu0
      %858 = vdwg.mxu0
      %v859 = vmul.f32 %v853, %v400
      %v860 = vmul.f32 %v855, %v404
      %v861 = vadd.f32 %v796, %v859
      %v862 = vadd.f32 %v797, %v860
      %s863 = scalar_lea.vmem %s2, 14
      %v864 = vld [vmem:[%s863] sm:$0x3]
      %865 = vrot.lane.b32.xlu0 %v341, 95
      %v866 = vpop.permute.xlu0 %865
      %867 = vrot.lane.b32.xlu0 %v342, 95
      %v868 = vpop.permute.xlu0 %867
      %869 = vrot.lane.b32.xlu0 %v465, 95
      %v870 = vpop.permute.xlu0 %869
      %vm871 = vcmask 777216
      %v872 = vsel %vm871, %v866, %v868
      %v873 = vsel %vm871, %v868, %v870
      %v875 = vsel %vm343, %v864, 0
      %v878 = vsel %vm347, %v872, 0
      %v881 = vsel %vm347, %v873, 0
      %883 = vmatprep.subr.bf16.mxu0 %v881
      %884 = vmatpush1.bf16.msra.mxu0 %v878
      %885 = vmatprep.subr.bf16.mxu0 0
      %886 = vmatpush1.bf16.msra.mxu0 0
      %887 = vmatprep.subr.bf16.mxu0 0
      %888 = vmatpush1.bf16.msra.mxu0 0
      %889 = vmatprep.subr.bf16.mxu0 0
      %890 = vmatpush1.bf16.msra.mxu0 0
      %891 = vmatprep.subr.bf16.mxu0 0
      %892 = vmatpush1.bf16.msra.mxu0 0
      %893 = vmatprep.subr.bf16.mxu0 0
      %894 = vmatpush1.bf16.msra.mxu0 0
      %895 = vmatprep.subr.bf16.mxu0 0
      %896 = vmatpush1.bf16.msra.mxu0 0
      %897 = vmatprep.subr.bf16.mxu0 0
      %898 = vmatpush1.bf16.msra.mxu0 0
      %899 = vmatprep.subr.bf16.mxu0 0
      %900 = vmatpush1.bf16.msra.mxu0 0
      %901 = vmatprep.subr.bf16.mxu0 0
      %902 = vmatpush1.bf16.msra.mxu0 0
      %903 = vmatprep.subr.bf16.mxu0 0
      %904 = vmatpush1.bf16.msra.mxu0 0
      %905 = vmatprep.subr.bf16.mxu0 0
      %906 = vmatpush1.bf16.msra.mxu0 0
      %907 = vmatprep.subr.bf16.mxu0 0
      %908 = vmatpush1.bf16.msra.mxu0 0
      %909 = vmatprep.subr.bf16.mxu0 0
      %910 = vmatpush1.bf16.msra.mxu0 0
      %911 = vmatprep.subr.bf16.mxu0 0
      %912 = vmatpush1.bf16.msra.mxu0 0
      %913 = vmatprep.subr.bf16.mxu0 0
      %914 = vmatpush1.bf16.msra.mxu0 0
      %915 = vmatprep.mubr.bf16.mxu0 0
      %916 = vmatmul.mubr.bf16.gmra.mrb[0].mxu0 %v875
      %v917 = vpop.f32.mrb[0].mxu0
      %v918 = vadd.f32 0.0, %v917
      %v919 = vpop.f32.mrb[0].mxu0
      %v920 = vadd.f32 0.0, %v919
      %v921 = vpop.f32.mrb[0].mxu0
      %v922 = vpop.f32.mrb[0].mxu0
      %923 = vdwg.mxu0
      %v924 = vadd.f32 %v861, %v918
      %v925 = vadd.f32 %v862, %v920
      %s926 = scalar_lea.vmem %s2, 16
      %v927 = vld [vmem:[%s926] sm:$0x3]
      %928 = vrot.lane.b32.xlu0 %v341, 94
      %v929 = vpop.permute.xlu0 %928
      %930 = vrot.lane.b32.xlu0 %v342, 94
      %v931 = vpop.permute.xlu0 %930
      %932 = vrot.lane.b32.xlu0 %v465, 94
      %v933 = vpop.permute.xlu0 %932
      %vm934 = vcmask 769024
      %v935 = vsel %vm934, %v929, %v931
      %v936 = vsel %vm934, %v931, %v933
      %v938 = vsel %vm343, %v927, 0
      %v941 = vsel %vm347, %v935, 0
      %v944 = vsel %vm347, %v936, 0
      %946 = vmatprep.subr.bf16.mxu0 %v944
      %947 = vmatpush1.bf16.msra.mxu0 %v941
      %948 = vmatprep.subr.bf16.mxu0 0
      %949 = vmatpush1.bf16.msra.mxu0 0
      %950 = vmatprep.subr.bf16.mxu0 0
      %951 = vmatpush1.bf16.msra.mxu0 0
      %952 = vmatprep.subr.bf16.mxu0 0
      %953 = vmatpush1.bf16.msra.mxu0 0
      %954 = vmatprep.subr.bf16.mxu0 0
      %955 = vmatpush1.bf16.msra.mxu0 0
      %956 = vmatprep.subr.bf16.mxu0 0
      %957 = vmatpush1.bf16.msra.mxu0 0
      %958 = vmatprep.subr.bf16.mxu0 0
      %959 = vmatpush1.bf16.msra.mxu0 0
      %960 = vmatprep.subr.bf16.mxu0 0
      %961 = vmatpush1.bf16.msra.mxu0 0
      %962 = vmatprep.subr.bf16.mxu0 0
      %963 = vmatpush1.bf16.msra.mxu0 0
      %964 = vmatprep.subr.bf16.mxu0 0
      %965 = vmatpush1.bf16.msra.mxu0 0
      %966 = vmatprep.subr.bf16.mxu0 0
      %967 = vmatpush1.bf16.msra.mxu0 0
      %968 = vmatprep.subr.bf16.mxu0 0
      %969 = vmatpush1.bf16.msra.mxu0 0
      %970 = vmatprep.subr.bf16.mxu0 0
      %971 = vmatpush1.bf16.msra.mxu0 0
      %972 = vmatprep.subr.bf16.mxu0 0
      %973 = vmatpush1.bf16.msra.mxu0 0
      %974 = vmatprep.subr.bf16.mxu0 0
      %975 = vmatpush1.bf16.msra.mxu0 0
      %976 = vmatprep.subr.bf16.mxu0 0
      %977 = vmatpush1.bf16.msra.mxu0 0
      %978 = vmatprep.mubr.bf16.mxu0 0
      %979 = vmatmul.mubr.bf16.gmra.mrb[0].mxu0 %v938
      %v980 = vpop.f32.mrb[0].mxu0
      %v981 = vadd.f32 0.0, %v980
      %v982 = vpop.f32.mrb[0].mxu0
      %v983 = vadd.f32 0.0, %v982
      %v984 = vpop.f32.mrb[0].mxu0
      %v985 = vpop.f32.mrb[0].mxu0
      %986 = vdwg.mxu0
      %v987 = vmul.f32 %v981, %v594
      %v988 = vmul.f32 %v983, %v598
      %v989 = vadd.f32 %v924, %v987
      %v990 = vadd.f32 %v925, %v988
      %v991 = vld [vmem:[%s4] sm:$0xf]
      %993 = vset.pattern.permute.xlu0 0
      %994 = vperm.xlu0 %993, %v991
      %v995 = vpop.permute.xlu0 %994
      %v997 = vadd.f32 %v989, %v995
      %v998 = vadd.f32 %v990, %v995
      %v999 = vmax.f32 %v997, 0.0
      %v1000 = vmax.f32 %v998, 0.0
      %v1001 = vld [vmem:[%s5] sm:$0xf]
      %1003 = vset.pattern.permute.xlu0 0
      %1004 = vperm.xlu0 %1003, %v1001
      %v1005 = vpop.permute.xlu0 %1004
      %v1007 = vmul.f32 %v999, %v1005
      %v1008 = vmul.f32 %v1000, %v1005
      %vm1009 = vcmask 1043456
      %v1010 = vsel %vm1009, %v1007, 0.0
      %v1011 = vrot.slane %v1010, 4
      %v1012 = vadd.f32 %v1010, %v1011
      %v1013 = vrot.slane %v1012, 2
      %v1014 = vadd.f32 %v1012, %v1013
      %v1015 = vrot.slane %v1014, 1
      %v1016 = vadd.f32 %v1014, %v1015
      %v1017 = vsel %vm1009, %v1008, 0.0
      %v1018 = vrot.slane %v1017, 4
      %v1019 = vadd.f32 %v1017, %v1018
      %v1020 = vrot.slane %v1019, 2
      %v1021 = vadd.f32 %v1019, %v1020
      %v1022 = vrot.slane %v1021, 1
      %v1023 = vadd.f32 %v1021, %v1022
      %s1024 = sld [smem:[#allocation2]]
      %v1025 = vstv %s1024
      %v1026 = vadd.f32 %v1016, %v1025
      %v1027 = vadd.f32 %v1023, %v1025
      %v1028 = vxor.u32 %v1026, 2147483648
      %v1029 = vxor.u32 %v1027, 2147483648
      %v1030 = vmul.f32 %v1028, 1.442695
      %v1031 = vpow.pop %v1030
      %v1032 = vmul.f32 %v1029, 1.442695
      %v1033 = vpow.pop %v1032
      %v1034 = vadd.f32 %v1031, 1.0
      %v1035 = vadd.f32 %v1033, 1.0
      %v1036 = vrcp.pop %v1034
      %v1037 = vmul.f32 1.0, %v1036
      %v1038 = vrcp.pop %v1035
      %v1039 = vmul.f32 1.0, %v1038
      %v1042 = vcombine.low %v1037, %v1039
      %v1044 = vmul.f32 %v328, %v1042
      %1045 = vst [vmem:[%s326] sm:$0xff] %v1044
      %p1046 = scmp.lt.s32.totalorder %s20, 1
      %s1047 = scalar_select %p1046, %s20, 1
      %s1048 = smul.addr %s1047, 2
      %s1049 = smul.addr %s1048, 4
      %s1050 = scalar_lea.vmem %s8, %s1049
      // Predicated region
      $region53: #{csa2d_forward.3} parent=51 // pred_check
        %p1051 = pneg %p216
      $region54: #{csa2d_forward.3} parent=51 // pred_check_branch
        %1053 = sbr.rel (%p1051) target = $region56
      $region55: #{csa2d_forward.3} parent=51 // pred_region
        _
      $region56: #{csa2d_forward.3} parent=51 // pred_fallthru
        _
    $region52: #{csa2d_forward.3} parent=5 // pred_fallthru
      _
    %p1054 = scmp.le.s32.totalorder 2, %s15
    // Predicated region
    $region57: #{csa2d_forward.3} parent=5 // pred_check
      %p1055 = pneg %p1054
    $region58: #{csa2d_forward.3} parent=5 // pred_check_branch
      %1057 = sbr.rel (%p1055) target = $region60
    $region59: #{csa2d_forward.3} parent=5 // pred_region
      %s1058 = ssub.s32 %s15, 2
      // Predicated region
      $region61: #{csa2d_forward.3} parent=59 // pred_check
        %p1059 = pneg %p222
      $region62: #{csa2d_forward.3} parent=59 // pred_check_branch
        %1061 = sbr.rel (%p1059) target = $region64
      $region63: #{csa2d_forward.3} parent=59 // pred_region
        %p1062 = scmp.lt.s32.totalorder %s21, 1
        %s1063 = scalar_select %p1062, %s21, 1
        %s1064 = smul.addr %s1063, 2
        %s1065 = smul.addr %s1064, 4
        %s1066 = scalar_lea.vmem %s8, %s1065
      $region64: #{csa2d_forward.3} parent=59 // pred_fallthru
        _
    $region60: #{csa2d_forward.3} parent=5 // pred_fallthru
      _
  $region6: #{csa2d_forward.3} parent=0 // loop_footer
    %s19 = sadd.s32 1, %s15
  $region7: #{csa2d_forward.3} parent=0 // loop_footer_branch
    %14 = sbr.rel target = $region3
  $region8: #{csa2d_forward.3} parent=0 // loop_exit
    _

// kernel: squeeze.9
$region0: #{squeeze.9}
  %s0 = inlined_call_operand.vmem [shape: f32[2,64], index: 0, kind: input, shape index: {}]
  %s1 = inlined_call_operand.vmem [shape: f32[2,8,8], index: 1, kind: output, shape index: {}]
  $region1: #{squeeze.9} parent=0
    #allocation0 [shape = 'u8[4096]{0}', space=vmem, size = 0x1000, scoped, tag = 'scoped mem for input reshape']
    %s3 = sshllo.u32 0, 2
    %v4 = vld [vmem:[%s0] sm:%s3]
    %5 = vst [vmem:[#allocation0] sm:%s3] %v4
    %v6 = vld [vmem:[#allocation0] sm:$0x3]
    %vm7 = vcmask 64512
    %8 = vst.msk [vmem:[%s1] ss:$8 sm:$0x3] %vm7, %v6
    %v9 = vld [vmem:[#allocation0] sm:$0x3]
    %10 = vrot.lane.b32.xlu0 %v9, 120
    %v11 = vpop.permute.xlu0 %10
    %vm12 = vcmask 64512
    %s13 = scalar_lea.vmem %s1, 1
    %14 = vst.msk [vmem:[%s13] ss:$8 sm:$0x3] %vm12, %v11
    %v15 = vld [vmem:[#allocation0] sm:$0x3]
    %16 = vrot.lane.b32.xlu0 %v15, 112
    %v17 = vpop.permute.xlu0 %16
    %vm18 = vcmask 64512
    %s19 = scalar_lea.vmem %s1, 2
    %20 = vst.msk [vmem:[%s19] ss:$8 sm:$0x3] %vm18, %v17
    %v21 = vld [vmem:[#allocation0] sm:$0x3]
    %22 = vrot.lane.b32.xlu0 %v21, 104
    %v23 = vpop.permute.xlu0 %22
    %vm24 = vcmask 64512
    %s25 = scalar_lea.vmem %s1, 3
    %26 = vst.msk [vmem:[%s25] ss:$8 sm:$0x3] %vm24, %v23
    %v27 = vld [vmem:[#allocation0] sm:$0x3]
    %28 = vrot.lane.b32.xlu0 %v27, 96
    %v29 = vpop.permute.xlu0 %28
    %vm30 = vcmask 64512
    %s31 = scalar_lea.vmem %s1, 4
    %32 = vst.msk [vmem:[%s31] ss:$8 sm:$0x3] %vm30, %v29
    %v33 = vld [vmem:[#allocation0] sm:$0x3]
    %34 = vrot.lane.b32.xlu0 %v33, 88
    %v35 = vpop.permute.xlu0 %34
    %vm36 = vcmask 64512
    %s37 = scalar_lea.vmem %s1, 5
    %38 = vst.msk [vmem:[%s37] ss:$8 sm:$0x3] %vm36, %v35
    %v39 = vld [vmem:[#allocation0] sm:$0x3]
    %40 = vrot.lane.b32.xlu0 %v39, 80
    %v41 = vpop.permute.xlu0 %40
    %vm42 = vcmask 64512
    %s43 = scalar_lea.vmem %s1, 6
    %44 = vst.msk [vmem:[%s43] ss:$8 sm:$0x3] %vm42, %v41
    %v45 = vld [vmem:[#allocation0] sm:$0x3]
    %46 = vrot.lane.b32.xlu0 %v45, 72
    %v47 = vpop.permute.xlu0 %46
    %vm48 = vcmask 64512
    %s49 = scalar_lea.vmem %s1, 7
    %50 = vst.msk [vmem:[%s49] ss:$8 sm:$0x3] %vm48, %v47

// kernel: csa2d_forward.4
$region0: #{csa2d_forward.4}
  #allocation0 [shape = 'u32[]', space=smem, size = 0x4, offset = 0x4, fixed_abs, tag = 'smem constant byte address 0x4 - core index']
  #allocation1 [shape = 'u32[144,128]{1,0:T(1,128)}', space=vmem, size = 0x12000, scoped, tag = 'internal scratch']
  #allocation2 [shape = 'f32[1,1]{1,0:T(1,128)S(6)}', space=smem, size = 0x200, scoped, tag = 'scoped memory for csa2d_forward.4']
  %s0 = inlined_call_operand.vmem [shape: bf16[2,44,128], index: 0, kind: input, shape index: {}]
  %s1 = inlined_call_operand.vmem [shape: bf16[8,44], index: 1, kind: input, shape index: {}]
  %s2 = inlined_call_operand.vmem [shape: f32[8,1], index: 2, kind: input, shape index: {}]
  %s3 = inlined_call_operand.vmem [shape: f32[8,1], index: 3, kind: input, shape index: {}]
  %s4 = inlined_call_operand.<no memory space> [shape: f32[1,1], index: 4, kind: input, shape index: {}]
  %s5 = inlined_call_operand.vmem [shape: f32[2,1,128], index: 5, kind: output, shape index: {}]
  %s6 = sld [smem:[#allocation0]]
  $region53: #{csa2d_forward.4} parent=0
    _
  %s8 = ssub.s32 1, %s6
  %s9 = scalar_select 0, %s8, %s6
  %10 = sst [smem:[#allocation2]] %s4
  loop: start=0, step=1, limit=4
  $region2: #{csa2d_forward.4} parent=0 // loop_pre_header
    _
  $region3: #{csa2d_forward.4} parent=0 // loop_header
    %s12 = sphi 0, %s16
    %p13 = scmp.ge.s32.totalorder %s12, 4
    %s22 = sphi 0, %s24
    %s25 = sphi 0, %s22
    %s26 = sphi 0, %s25
    %s42 = sphi 0, %s26
    %s46 = sphi 0, %s46
    %s48 = sphi 0, %s46
    %s49 = sphi 0, %s48
    %s63 = sphi 0, %s49
    %s67 = sphi 0, %s67
    %s69 = sphi 0, %s67
    %s70 = sphi 0, %s69
    %s84 = sphi 0, %s70
    %s88 = sphi 0, %s88
    %s90 = sphi 0, %s88
    %s91 = sphi 0, %s90
    %s105 = sphi 0, %s91
    %s109 = sphi 0, %s109
    %s111 = sphi 0, %s109
    %s112 = sphi 0, %s111
    %s126 = sphi 0, %s112
    %s132 = sphi 0, %s134
    %s135 = sphi 0, %s132
    %s136 = sphi 0, %s135
    %s152 = sphi 0, %s136
  $region4: #{csa2d_forward.4} parent=0 // loop_header_branch
    %15 = sbr.rel (%p13) target = $region8
  $region5: #{csa2d_forward.4} parent=0 // loop_body
    %s17 = ssub.s32 %s12, 1
    %s18 = ssub.s32 %s12, 2
    %s19 = sadd.s32 %s12, 1
    %s20 = ssub.s32 %s12, %s19
    %p21 = scmp.eq.s32.totalorder %s20, 0
    %s23 = sadd.s32 %s22, 1
    %s24 = scalar_select %p21, %s22, %s23
    %p27 = pneg %p21
    %p28 = scmp.eq.s32.totalorder %s12, 1
    %p29 = por %p27, %p28
    %p30 = scmp.ne.s32.totalorder %s22, %s25
    %p31 = scmp.eq.s32.totalorder %s12, 0
    %p32 = por %p30, %p31
    %p33 = scmp.ne.s32.totalorder %s22, %s25
    %p34 = scmp.eq.s32.totalorder %s17, 1
    %p35 = por %p33, %p34
    %p36 = scmp.ne.s32.totalorder %s25, %s26
    %p37 = scmp.eq.s32.totalorder %s17, 0
    %p38 = por %p36, %p37
    %p39 = scmp.ne.s32.totalorder %s25, %s26
    %p40 = scmp.eq.s32.totalorder %s18, 1
    %p41 = por %p39, %p40
    %p43 = scmp.ne.s32.totalorder %s26, %s42
    %p44 = scmp.eq.s32.totalorder %s18, 0
    %p45 = por %p43, %p44
    %s47 = sadd.s32 %s46, 1
    %p50 = scmp.eq.s32.totalorder %s12, 1
    %p51 = scmp.ne.s32.totalorder %s46, %s48
    %p52 = scmp.eq.s32.totalorder %s12, 0
    %p53 = por %p51, %p52
    %p54 = scmp.ne.s32.totalorder %s46, %s48
    %p55 = scmp.eq.s32.totalorder %s17, 1
    %p56 = por %p54, %p55
    %p57 = scmp.ne.s32.totalorder %s48, %s49
    %p58 = scmp.eq.s32.totalorder %s17, 0
    %p59 = por %p57, %p58
    %p60 = scmp.ne.s32.totalorder %s48, %s49
    %p61 = scmp.eq.s32.totalorder %s18, 1
    %p62 = por %p60, %p61
    %p64 = scmp.ne.s32.totalorder %s49, %s63
    %p65 = scmp.eq.s32.totalorder %s18, 0
    %p66 = por %p64, %p65
    %s68 = sadd.s32 %s67, 1
    %p71 = scmp.eq.s32.totalorder %s12, 1
    %p72 = scmp.ne.s32.totalorder %s67, %s69
    %p73 = scmp.eq.s32.totalorder %s12, 0
    %p74 = por %p72, %p73
    %p75 = scmp.ne.s32.totalorder %s67, %s69
    %p76 = scmp.eq.s32.totalorder %s17, 1
    %p77 = por %p75, %p76
    %p78 = scmp.ne.s32.totalorder %s69, %s70
    %p79 = scmp.eq.s32.totalorder %s17, 0
    %p80 = por %p78, %p79
    %p81 = scmp.ne.s32.totalorder %s69, %s70
    %p82 = scmp.eq.s32.totalorder %s18, 1
    %p83 = por %p81, %p82
    %p85 = scmp.ne.s32.totalorder %s70, %s84
    %p86 = scmp.eq.s32.totalorder %s18, 0
    %p87 = por %p85, %p86
    %s89 = sadd.s32 %s88, 1
    %p92 = scmp.eq.s32.totalorder %s12, 1
    %p93 = scmp.ne.s32.totalorder %s88, %s90
    %p94 = scmp.eq.s32.totalorder %s12, 0
    %p95 = por %p93, %p94
    %p96 = scmp.ne.s32.totalorder %s88, %s90
    %p97 = scmp.eq.s32.totalorder %s17, 1
    %p98 = por %p96, %p97
    %p99 = scmp.ne.s32.totalorder %s90, %s91
    %p100 = scmp.eq.s32.totalorder %s17, 0
    %p101 = por %p99, %p100
    %p102 = scmp.ne.s32.totalorder %s90, %s91
    %p103 = scmp.eq.s32.totalorder %s18, 1
    %p104 = por %p102, %p103
    %p106 = scmp.ne.s32.totalorder %s91, %s105
    %p107 = scmp.eq.s32.totalorder %s18, 0
    %p108 = por %p106, %p107
    %s110 = sadd.s32 %s109, 1
    %p113 = scmp.eq.s32.totalorder %s12, 1
    %p114 = scmp.ne.s32.totalorder %s109, %s111
    %p115 = scmp.eq.s32.totalorder %s12, 0
    %p116 = por %p114, %p115
    %p117 = scmp.ne.s32.totalorder %s109, %s111
    %p118 = scmp.eq.s32.totalorder %s17, 1
    %p119 = por %p117, %p118
    %p120 = scmp.ne.s32.totalorder %s111, %s112
    %p121 = scmp.eq.s32.totalorder %s17, 0
    %p122 = por %p120, %p121
    %p123 = scmp.ne.s32.totalorder %s111, %s112
    %p124 = scmp.eq.s32.totalorder %s18, 1
    %p125 = por %p123, %p124
    %p127 = scmp.ne.s32.totalorder %s112, %s126
    %p128 = scmp.eq.s32.totalorder %s18, 0
    %p129 = por %p127, %p128
    %s130 = ssub.s32 %s12, %s19
    %p131 = scmp.eq.s32.totalorder %s130, 0
    %s133 = sadd.s32 %s132, 1
    %s134 = scalar_select %p131, %s132, %s133
    %p137 = pneg %p131
    %p138 = scmp.eq.s32.totalorder %s12, 1
    %p139 = por %p137, %p138
    %p140 = scmp.ne.s32.totalorder %s132, %s135
    %p141 = scmp.eq.s32.totalorder %s12, 0
    %p142 = por %p140, %p141
    %p143 = scmp.ne.s32.totalorder %s132, %s135
    %p144 = scmp.eq.s32.totalorder %s17, 1
    %p145 = por %p143, %p144
    %p146 = scmp.ne.s32.totalorder %s135, %s136
    %p147 = scmp.eq.s32.totalorder %s17, 0
    %p148 = por %p146, %p147
    %p149 = scmp.ne.s32.totalorder %s135, %s136
    %p150 = scmp.eq.s32.totalorder %s18, 1
    %p151 = por %p149, %p150
    %p153 = scmp.ne.s32.totalorder %s136, %s152
    %p154 = scmp.eq.s32.totalorder %s18, 0
    %p155 = por %p153, %p154
    %p156 = scmp.le.s32.totalorder 1, %s12
    %p157 = scmp.lt.s32.totalorder %s12, 3
    %p158 = pnand %p156, %p157
    %p159 = pneg %p158
    // Predicated region
    $region9: #{csa2d_forward.4} parent=5 // pred_check
      _
    $region10: #{csa2d_forward.4} parent=5 // pred_check_branch
      %161 = sbr.rel (%p158) target = $region12
    $region11: #{csa2d_forward.4} parent=5 // pred_region
      %s162 = ssub.s32 %s12, 1
      // Predicated region
      $region13: #{csa2d_forward.4} parent=11 // pred_check
        %p163 = pneg %p59
      $region14: #{csa2d_forward.4} parent=11 // pred_check_branch
        %165 = sbr.rel (%p163) target = $region16
      $region15: #{csa2d_forward.4} parent=11 // pred_region
        _
      $region16: #{csa2d_forward.4} parent=11 // pred_fallthru
        _
      // Predicated region
      $region17: #{csa2d_forward.4} parent=11 // pred_check
        %p166 = pneg %p80
      $region18: #{csa2d_forward.4} parent=11 // pred_check_branch
        %168 = sbr.rel (%p166) target = $region20
      $region19: #{csa2d_forward.4} parent=11 // pred_region
        _
      $region20: #{csa2d_forward.4} parent=11 // pred_fallthru
        _
      // Predicated region
      $region21: #{csa2d_forward.4} parent=11 // pred_check
        %p169 = pneg %p101
      $region22: #{csa2d_forward.4} parent=11 // pred_check_branch
        %171 = sbr.rel (%p169) target = $region24
      $region23: #{csa2d_forward.4} parent=11 // pred_region
        _
      $region24: #{csa2d_forward.4} parent=11 // pred_fallthru
        _
      // Predicated region
      $region25: #{csa2d_forward.4} parent=11 // pred_check
        %p172 = pneg %p122
      $region26: #{csa2d_forward.4} parent=11 // pred_check_branch
        %174 = sbr.rel (%p172) target = $region28
      $region27: #{csa2d_forward.4} parent=11 // pred_region
        _
      $region28: #{csa2d_forward.4} parent=11 // pred_fallthru
        _
    $region12: #{csa2d_forward.4} parent=5 // pred_fallthru
      _
    %p175 = scmp.lt.s32.totalorder %s12, 2
    // Predicated region
    $region29: #{csa2d_forward.4} parent=5 // pred_check
      %p176 = pneg %p175
    $region30: #{csa2d_forward.4} parent=5 // pred_check_branch
      %178 = sbr.rel (%p176) target = $region32
    $region31: #{csa2d_forward.4} parent=5 // pred_region
      // Predicated region
      $region33: #{csa2d_forward.4} parent=31 // pred_check
        %p179 = pneg %p32
      $region34: #{csa2d_forward.4} parent=31 // pred_check_branch
        %181 = sbr.rel (%p179) target = $region36
      $region35: #{csa2d_forward.4} parent=31 // pred_region
        %p182 = scmp.lt.s32.totalorder %s12, 1
        %s183 = scalar_select %p182, %s12, 1
        %s184 = smul.addr %s183, 6
        %s185 = smul.addr %s184, 4
        %s186 = scalar_lea.vmem %s0, %s185
      $region36: #{csa2d_forward.4} parent=31 // pred_fallthru
        _
    $region32: #{csa2d_forward.4} parent=5 // pred_fallthru
      _
    %p187 = scmp.le.s32.totalorder 1, %s12
    %p188 = scmp.lt.s32.totalorder %s12, 3
    %p189 = pnand %p187, %p188
    %p190 = pneg %p189
    // Predicated region
    $region37: #{csa2d_forward.4} parent=5 // pred_check
      _
    $region38: #{csa2d_forward.4} parent=5 // pred_check_branch
      %192 = sbr.rel (%p189) target = $region40
    $region39: #{csa2d_forward.4} parent=5 // pred_region
      %s193 = ssub.s32 %s12, 1
      %p194 = scmp.lt.s32.totalorder %s17, 1
      %s195 = scalar_select %p194, %s17, 1
      %s196 = smul.addr %s195, 6
      %s197 = smul.addr %s196, 4
      %s198 = scalar_lea.vmem %s0, %s197
      %p199 = pneg %p38
      %p200 = pneg %p35
      %p201 = pneg %p59
      %p202 = pneg %p56
      %p203 = pneg %p80
      %p204 = pneg %p77
      %p205 = pneg %p101
      %p206 = pneg %p98
      %p207 = pneg %p122
      %p208 = pneg %p119
      %p209 = pneg %p148
      %p210 = pneg %p145
      %p211 = scmp.lt.s32.totalorder %s17, 1
      %s212 = scalar_select %p211, %s17, 1
      %s213 = scalar_lea.vmem %s5, %s212
      %p214 = scmp.lt.s32.totalorder %s17, 1
      %s215 = scalar_select %p214, %s17, 1
      %s216 = smul.addr %s215, 6
      %s217 = smul.addr %s216, 4
      %s218 = scalar_lea.vmem %s0, %s217
      %p219 = scmp.lt.s32.totalorder %s17, 1
      %s220 = scalar_select %p219, %s17, 1
      %s221 = scalar_lea.vmem %s5, %s220
      %v223 = vld [vmem:[%s1] sm:$0xf]
      %v224 = vld [vmem:[%s218] sm:$0xf]
      %v225 = vld [vmem:[%s218 + $0x4] sm:$0xf]
      %v226 = vld [vmem:[%s218 + $0x8] sm:$0xf]
      %v227 = vld [vmem:[%s218 + $0xc] sm:$0xf]
      %v228 = vld [vmem:[%s218 + $0x10] sm:$0xf]
      %v229 = vld [vmem:[%s218 + $0x14] sm:$0x3]
      %v230 = vld [vmem:[%s2] sm:$0xff]
      %232 = vset.pattern.permute.xlu0 0
      %233 = vperm.xlu0 %232, %v230
      %v234 = vpop.permute.xlu0 %233
      %v242 = vunpack.c.l.b16 %v224
      %v243 = vunpack.c.l.b16 %v225
      %v244 = vunpack.c.l.b16 %v226
      %v245 = vunpack.c.l.b16 %v227
      %v246 = vunpack.c.l.b16 %v228
      %v247 = vunpack.c.l.b16 %v229
      %v248 = vpack.c.b16 %v243, %v242
      %v249 = vpack.c.b16 %v245, %v244
      %v250 = vpack.c.b16 %v247, %v246
      %vm253 = vcmask 359424
      %v255 = vsel %vm253, %v223, 0
      %vm257 = vcmask 1045504
      %v259 = vsel %vm257, %v250, 0
      %261 = vmatprep.subr.bf16.mxu0 0
      %262 = vmatpush1.bf16.msra.mxu0 %v248
      %263 = vmatprep.subr.bf16.mxu0 0
      %264 = vmatpush1.bf16.msra.mxu0 %v249
      %265 = vmatprep.subr.bf16.mxu0 0
      %266 = vmatpush1.bf16.msra.mxu0 %v259
      %267 = vmatprep.subr.bf16.mxu0 0
      %268 = vmatpush1.bf16.msra.mxu0 0
      %269 = vmatprep.subr.bf16.mxu0 0
      %270 = vmatpush1.bf16.msra.mxu0 0
      %271 = vmatprep.subr.bf16.mxu0 0
      %272 = vmatpush1.bf16.msra.mxu0 0
      %273 = vmatprep.subr.bf16.mxu0 0
      %274 = vmatpush1.bf16.msra.mxu0 0
      %275 = vmatprep.subr.bf16.mxu0 0
      %276 = vmatpush1.bf16.msra.mxu0 0
      %277 = vmatprep.subr.bf16.mxu0 0
      %278 = vmatpush1.bf16.msra.mxu0 0
      %279 = vmatprep.subr.bf16.mxu0 0
      %280 = vmatpush1.bf16.msra.mxu0 0
      %281 = vmatprep.subr.bf16.mxu0 0
      %282 = vmatpush1.bf16.msra.mxu0 0
      %283 = vmatprep.subr.bf16.mxu0 0
      %284 = vmatpush1.bf16.msra.mxu0 0
      %285 = vmatprep.subr.bf16.mxu0 0
      %286 = vmatpush1.bf16.msra.mxu0 0
      %287 = vmatprep.subr.bf16.mxu0 0
      %288 = vmatpush1.bf16.msra.mxu0 0
      %289 = vmatprep.subr.bf16.mxu0 0
      %290 = vmatpush1.bf16.msra.mxu0 0
      %291 = vmatprep.subr.bf16.mxu0 0
      %292 = vmatpush1.bf16.msra.mxu0 0
      %293 = vmatprep.mubr.bf16.mxu0 0
      %294 = vmatmul.mubr.bf16.gmra.mrb[0].mxu0 %v255
      %v295 = vpop.f32.mrb[0].mxu0
      %v296 = vadd.f32 %v234, %v295
      %v297 = vpop.f32.mrb[0].mxu0
      %v298 = vpop.f32.mrb[0].mxu0
      %v299 = vpop.f32.mrb[0].mxu0
      %300 = vdwg.mxu0
      %v301 = vmax.f32 %v296, 0.0
      %v302 = vld [vmem:[%s3] sm:$0xff]
      %304 = vset.pattern.permute.xlu0 0
      %305 = vperm.xlu0 %304, %v302
      %v306 = vpop.permute.xlu0 %305
      %v308 = vmul.f32 %v301, %v306
      %v309 = vrot.slane %v308, 4
      %v310 = vadd.f32 %v308, %v309
      %v311 = vrot.slane %v310, 2
      %v312 = vadd.f32 %v310, %v311
      %v313 = vrot.slane %v312, 1
      %v314 = vadd.f32 %v312, %v313
      %s315 = sld [smem:[#allocation2]]
      %v316 = vstv %s315
      %v317 = vadd.f32 %v314, %v316
      %v318 = vxor.u32 %v317, 2147483648
      %v319 = vmul.f32 %v318, 1.442695
      %v320 = vpow.pop %v319
      %v321 = vadd.f32 %v320, 1.0
      %v322 = vrcp.pop %v321
      %v323 = vmul.f32 1.0, %v322
      %324 = vst [vmem:[%s221] sm:$0x1] %v323
      %p325 = scmp.lt.s32.totalorder %s17, 1
      %s326 = scalar_select %p325, %s17, 1
      %s327 = scalar_lea.vmem %s5, %s326
      // Predicated region
      $region41: #{csa2d_forward.4} parent=39 // pred_check
        %p328 = pneg %p145
      $region42: #{csa2d_forward.4} parent=39 // pred_check_branch
        %330 = sbr.rel (%p328) target = $region44
      $region43: #{csa2d_forward.4} parent=39 // pred_region
        _
      $region44: #{csa2d_forward.4} parent=39 // pred_fallthru
        _
    $region40: #{csa2d_forward.4} parent=5 // pred_fallthru
      _
    %p331 = scmp.le.s32.totalorder 2, %s12
    // Predicated region
    $region45: #{csa2d_forward.4} parent=5 // pred_check
      %p332 = pneg %p331
    $region46: #{csa2d_forward.4} parent=5 // pred_check_branch
      %334 = sbr.rel (%p332) target = $region48
    $region47: #{csa2d_forward.4} parent=5 // pred_region
      %s335 = ssub.s32 %s12, 2
      // Predicated region
      $region49: #{csa2d_forward.4} parent=47 // pred_check
        %p336 = pneg %p151
      $region50: #{csa2d_forward.4} parent=47 // pred_check_branch
        %338 = sbr.rel (%p336) target = $region52
      $region51: #{csa2d_forward.4} parent=47 // pred_region
        %p339 = scmp.lt.s32.totalorder %s18, 1
        %s340 = scalar_select %p339, %s18, 1
        %s341 = scalar_lea.vmem %s5, %s340
      $region52: #{csa2d_forward.4} parent=47 // pred_fallthru
        _
    $region48: #{csa2d_forward.4} parent=5 // pred_fallthru
      _
  $region6: #{csa2d_forward.4} parent=0 // loop_footer
    %s16 = sadd.s32 1, %s12
  $region7: #{csa2d_forward.4} parent=0 // loop_footer_branch
    %11 = sbr.rel target = $region3
  $region8: #{csa2d_forward.4} parent=0 // loop_exit
    _

// kernel: csa2d_forward.5
$region0: #{csa2d_forward.5}
  #allocation0 [shape = 'u32[]', space=smem, size = 0x4, offset = 0x4, fixed_abs, tag = 'smem constant byte address 0x4 - core index']
  #allocation1 [shape = 'u32[144,128]{1,0:T(1,128)}', space=vmem, size = 0x12000, scoped, tag = 'internal scratch']
  %s0 = inlined_call_operand.vmem [shape: f32[2,4,256], index: 0, kind: input, shape index: {}]
  %s1 = inlined_call_operand.vmem [shape: f32[2,8,8], index: 1, kind: input, shape index: {}]
  %s2 = inlined_call_operand.vmem [shape: f32[16,8], index: 2, kind: input, shape index: {}]
  %s3 = inlined_call_operand.vmem [shape: f32[8,256], index: 3, kind: input, shape index: {}]
  %s4 = inlined_call_operand.vmem [shape: f32[16,256], index: 4, kind: input, shape index: {}]
  %s5 = inlined_call_operand.vmem [shape: f32[2,4,256], index: 5, kind: output, shape index: {}]
  %s6 = sld [smem:[#allocation0]]
  $region53: #{csa2d_forward.5} parent=0
    _
  %s8 = ssub.s32 1, %s6
  %s9 = scalar_select 0, %s8, %s6
  loop: start=0, step=1, limit=4
  $region2: #{csa2d_forward.5} parent=0 // loop_pre_header
    _
  $region3: #{csa2d_forward.5} parent=0 // loop_header
    %s11 = sphi 0, %s15
    %p12 = scmp.ge.s32.totalorder %s11, 4
    %s18 = sphi 0, %s30
    %s19 = sphi 0, %s26
    %s20 = sphi 0, %s18
    %s21 = sphi 0, %s19
    %s22 = sphi 0, %s20
    %s23 = sphi 0, %s21
    %s35 = sphi 0, %s37
    %s38 = sphi 0, %s35
    %s39 = sphi 0, %s38
    %s55 = sphi 0, %s39
    %s61 = sphi 0, %s63
    %s64 = sphi 0, %s61
    %s65 = sphi 0, %s64
    %s81 = sphi 0, %s65
    %s85 = sphi 0, %s85
    %s87 = sphi 0, %s85
    %s88 = sphi 0, %s87
    %s102 = sphi 0, %s88
    %s106 = sphi 0, %s106
    %s108 = sphi 0, %s106
    %s109 = sphi 0, %s108
    %s123 = sphi 0, %s109
    %s127 = sphi 0, %s127
    %s129 = sphi 0, %s127
    %s130 = sphi 0, %s129
    %s144 = sphi 0, %s130
    %s152 = sphi 0, %s154
    %s155 = sphi 0, %s152
    %s156 = sphi 0, %s155
    %s172 = sphi 0, %s156
  $region4: #{csa2d_forward.5} parent=0 // loop_header_branch
    %14 = sbr.rel (%p12) target = $region8
  $region5: #{csa2d_forward.5} parent=0 // loop_body
    %s16 = ssub.s32 %s11, 1
    %s17 = ssub.s32 %s11, 2
    %s24 = sadd.s32 1, %s19
    %p25 = scmp.ge.s32.totalorder %s24, 1
    %s26 = scalar_select %p25, 0, %s24
    %s27 = sadd.s32 1, %s18
    %s28 = scalar_select %p25, %s27, %s18
    %p29 = scmp.ge.s32.totalorder %s28, 2
    %s30 = scalar_select %p29, 0, %s28
    %s31 = ssub.s32 %s18, %s30
    %s32 = ssub.s32 %s19, %s26
    %s33 = sor.u32 %s31, %s32
    %p34 = scmp.eq.s32.totalorder %s33, 0
    %s36 = sadd.s32 %s35, 1
    %s37 = scalar_select %p34, %s35, %s36
    %p40 = pneg %p34
    %p41 = scmp.eq.s32.totalorder %s11, 1
    %p42 = por %p40, %p41
    %p43 = scmp.ne.s32.totalorder %s35, %s38
    %p44 = scmp.eq.s32.totalorder %s11, 0
    %p45 = por %p43, %p44
    %p46 = scmp.ne.s32.totalorder %s35, %s38
    %p47 = scmp.eq.s32.totalorder %s16, 1
    %p48 = por %p46, %p47
    %p49 = scmp.ne.s32.totalorder %s38, %s39
    %p50 = scmp.eq.s32.totalorder %s16, 0
    %p51 = por %p49, %p50
    %p52 = scmp.ne.s32.totalorder %s38, %s39
    %p53 = scmp.eq.s32.totalorder %s17, 1
    %p54 = por %p52, %p53
    %p56 = scmp.ne.s32.totalorder %s39, %s55
    %p57 = scmp.eq.s32.totalorder %s17, 0
    %p58 = por %p56, %p57
    %s59 = ssub.s32 %s18, %s30
    %p60 = scmp.eq.s32.totalorder %s59, 0
    %s62 = sadd.s32 %s61, 1
    %s63 = scalar_select %p60, %s61, %s62
    %p66 = pneg %p60
    %p67 = scmp.eq.s32.totalorder %s11, 1
    %p68 = por %p66, %p67
    %p69 = scmp.ne.s32.totalorder %s61, %s64
    %p70 = scmp.eq.s32.totalorder %s11, 0
    %p71 = por %p69, %p70
    %p72 = scmp.ne.s32.totalorder %s61, %s64
    %p73 = scmp.eq.s32.totalorder %s16, 1
    %p74 = por %p72, %p73
    %p75 = scmp.ne.s32.totalorder %s64, %s65
    %p76 = scmp.eq.s32.totalorder %s16, 0
    %p77 = por %p75, %p76
    %p78 = scmp.ne.s32.totalorder %s64, %s65
    %p79 = scmp.eq.s32.totalorder %s17, 1
    %p80 = por %p78, %p79
    %p82 = scmp.ne.s32.totalorder %s65, %s81
    %p83 = scmp.eq.s32.totalorder %s17, 0
    %p84 = por %p82, %p83
    %s86 = sadd.s32 %s85, 1
    %p89 = scmp.eq.s32.totalorder %s11, 1
    %p90 = scmp.ne.s32.totalorder %s85, %s87
    %p91 = scmp.eq.s32.totalorder %s11, 0
    %p92 = por %p90, %p91
    %p93 = scmp.ne.s32.totalorder %s85, %s87
    %p94 = scmp.eq.s32.totalorder %s16, 1
    %p95 = por %p93, %p94
    %p96 = scmp.ne.s32.totalorder %s87, %s88
    %p97 = scmp.eq.s32.totalorder %s16, 0
    %p98 = por %p96, %p97
    %p99 = scmp.ne.s32.totalorder %s87, %s88
    %p100 = scmp.eq.s32.totalorder %s17, 1
    %p101 = por %p99, %p100
    %p103 = scmp.ne.s32.totalorder %s88, %s102
    %p104 = scmp.eq.s32.totalorder %s17, 0
    %p105 = por %p103, %p104
    %s107 = sadd.s32 %s106, 1
    %p110 = scmp.eq.s32.totalorder %s11, 1
    %p111 = scmp.ne.s32.totalorder %s106, %s108
    %p112 = scmp.eq.s32.totalorder %s11, 0
    %p113 = por %p111, %p112
    %p114 = scmp.ne.s32.totalorder %s106, %s108
    %p115 = scmp.eq.s32.totalorder %s16, 1
    %p116 = por %p114, %p115
    %p117 = scmp.ne.s32.totalorder %s108, %s109
    %p118 = scmp.eq.s32.totalorder %s16, 0
    %p119 = por %p117, %p118
    %p120 = scmp.ne.s32.totalorder %s108, %s109
    %p121 = scmp.eq.s32.totalorder %s17, 1
    %p122 = por %p120, %p121
    %p124 = scmp.ne.s32.totalorder %s109, %s123
    %p125 = scmp.eq.s32.totalorder %s17, 0
    %p126 = por %p124, %p125
    %s128 = sadd.s32 %s127, 1
    %p131 = scmp.eq.s32.totalorder %s11, 1
    %p132 = scmp.ne.s32.totalorder %s127, %s129
    %p133 = scmp.eq.s32.totalorder %s11, 0
    %p134 = por %p132, %p133
    %p135 = scmp.ne.s32.totalorder %s127, %s129
    %p136 = scmp.eq.s32.totalorder %s16, 1
    %p137 = por %p135, %p136
    %p138 = scmp.ne.s32.totalorder %s129, %s130
    %p139 = scmp.eq.s32.totalorder %s16, 0
    %p140 = por %p138, %p139
    %p141 = scmp.ne.s32.totalorder %s129, %s130
    %p142 = scmp.eq.s32.totalorder %s17, 1
    %p143 = por %p141, %p142
    %p145 = scmp.ne.s32.totalorder %s130, %s144
    %p146 = scmp.eq.s32.totalorder %s17, 0
    %p147 = por %p145, %p146
    %s148 = ssub.s32 %s18, %s30
    %s149 = ssub.s32 %s19, %s26
    %s150 = sor.u32 %s148, %s149
    %p151 = scmp.eq.s32.totalorder %s150, 0
    %s153 = sadd.s32 %s152, 1
    %s154 = scalar_select %p151, %s152, %s153
    %p157 = pneg %p151
    %p158 = scmp.eq.s32.totalorder %s11, 1
    %p159 = por %p157, %p158
    %p160 = scmp.ne.s32.totalorder %s152, %s155
    %p161 = scmp.eq.s32.totalorder %s11, 0
    %p162 = por %p160, %p161
    %p163 = scmp.ne.s32.totalorder %s152, %s155
    %p164 = scmp.eq.s32.totalorder %s16, 1
    %p165 = por %p163, %p164
    %p166 = scmp.ne.s32.totalorder %s155, %s156
    %p167 = scmp.eq.s32.totalorder %s16, 0
    %p168 = por %p166, %p167
    %p169 = scmp.ne.s32.totalorder %s155, %s156
    %p170 = scmp.eq.s32.totalorder %s17, 1
    %p171 = por %p169, %p170
    %p173 = scmp.ne.s32.totalorder %s156, %s172
    %p174 = scmp.eq.s32.totalorder %s17, 0
    %p175 = por %p173, %p174
    %p176 = scmp.le.s32.totalorder 1, %s11
    %p177 = scmp.lt.s32.totalorder %s11, 3
    %p178 = pnand %p176, %p177
    %p179 = pneg %p178
    // Predicated region
    $region9: #{csa2d_forward.5} parent=5 // pred_check
      _
    $region10: #{csa2d_forward.5} parent=5 // pred_check_branch
      %181 = sbr.rel (%p178) target = $region12
    $region11: #{csa2d_forward.5} parent=5 // pred_region
      %s182 = ssub.s32 %s11, 1
      // Predicated region
      $region13: #{csa2d_forward.5} parent=11 // pred_check
        %p183 = pneg %p98
      $region14: #{csa2d_forward.5} parent=11 // pred_check_branch
        %185 = sbr.rel (%p183) target = $region16
      $region15: #{csa2d_forward.5} parent=11 // pred_region
        _
      $region16: #{csa2d_forward.5} parent=11 // pred_fallthru
        _
      // Predicated region
      $region17: #{csa2d_forward.5} parent=11 // pred_check
        %p186 = pneg %p119
      $region18: #{csa2d_forward.5} parent=11 // pred_check_branch
        %188 = sbr.rel (%p186) target = $region20
      $region19: #{csa2d_forward.5} parent=11 // pred_region
        _
      $region20: #{csa2d_forward.5} parent=11 // pred_fallthru
        _
      // Predicated region
      $region21: #{csa2d_forward.5} parent=11 // pred_check
        %p189 = pneg %p140
      $region22: #{csa2d_forward.5} parent=11 // pred_check_branch
        %191 = sbr.rel (%p189) target = $region24
      $region23: #{csa2d_forward.5} parent=11 // pred_region
        _
      $region24: #{csa2d_forward.5} parent=11 // pred_fallthru
        _
    $region12: #{csa2d_forward.5} parent=5 // pred_fallthru
      _
    %p192 = scmp.lt.s32.totalorder %s11, 2
    // Predicated region
    $region25: #{csa2d_forward.5} parent=5 // pred_check
      %p193 = pneg %p192
    $region26: #{csa2d_forward.5} parent=5 // pred_check_branch
      %195 = sbr.rel (%p193) target = $region28
    $region27: #{csa2d_forward.5} parent=5 // pred_region
      // Predicated region
      $region29: #{csa2d_forward.5} parent=27 // pred_check
        %p196 = pneg %p45
      $region30: #{csa2d_forward.5} parent=27 // pred_check_branch
        %198 = sbr.rel (%p196) target = $region32
      $region31: #{csa2d_forward.5} parent=27 // pred_region
        %s199 = smul.u32 2, %s19
        %p200 = scmp.lt.s32.totalorder %s18, 1
        %s201 = scalar_select %p200, %s18, 1
        %p202 = scmp.lt.s32.totalorder %s199, 1
        %s203 = scalar_select %p202, %s199, 1
        %s204 = smul.addr %s201, 2
        %s205 = sadd.s32 %s203, %s204
        %s206 = smul.addr %s205, 4
        %s207 = scalar_lea.vmem %s0, %s206
        %s208 = smul.u32 2, %s19
      $region32: #{csa2d_forward.5} parent=27 // pred_fallthru
        _
      // Predicated region
      $region33: #{csa2d_forward.5} parent=27 // pred_check
        %p209 = pneg %p71
      $region34: #{csa2d_forward.5} parent=27 // pred_check_branch
        %211 = sbr.rel (%p209) target = $region36
      $region35: #{csa2d_forward.5} parent=27 // pred_region
        %p212 = scmp.lt.s32.totalorder %s18, 1
        %s213 = scalar_select %p212, %s18, 1
        %s214 = smul.addr %s213, 8
        %s215 = scalar_lea.vmem %s1, %s214
      $region36: #{csa2d_forward.5} parent=27 // pred_fallthru
        _
    $region28: #{csa2d_forward.5} parent=5 // pred_fallthru
      _
    %p216 = scmp.le.s32.totalorder 1, %s11
    %p217 = scmp.lt.s32.totalorder %s11, 3
    %p218 = pnand %p216, %p217
    %p219 = pneg %p218
    // Predicated region
    $region37: #{csa2d_forward.5} parent=5 // pred_check
      _
    $region38: #{csa2d_forward.5} parent=5 // pred_check_branch
      %221 = sbr.rel (%p218) target = $region40
    $region39: #{csa2d_forward.5} parent=5 // pred_region
      %s222 = ssub.s32 %s11, 1
      %s223 = smul.u32 2, %s21
      %p224 = scmp.lt.s32.totalorder %s20, 1
      %s225 = scalar_select %p224, %s20, 1
      %p226 = scmp.lt.s32.totalorder %s223, 1
      %s227 = scalar_select %p226, %s223, 1
      %s228 = smul.addr %s225, 2
      %s229 = sadd.s32 %s227, %s228
      %s230 = smul.addr %s229, 4
      %s231 = scalar_lea.vmem %s0, %s230
      %p232 = pneg %p51
      %p233 = pneg %p48
      %p234 = scmp.lt.s32.totalorder %s20, 1
      %s235 = scalar_select %p234, %s20, 1
      %s236 = smul.addr %s235, 8
      %s237 = scalar_lea.vmem %s1, %s236
      %p238 = pneg %p77
      %p239 = pneg %p74
      %p240 = pneg %p98
      %p241 = pneg %p95
      %p242 = pneg %p119
      %p243 = pneg %p116
      %p244 = pneg %p140
      %p245 = pneg %p137
      %p246 = pneg %p168
      %p247 = pneg %p165
      %s248 = smul.u32 2, %s21
      %p249 = scmp.lt.s32.totalorder %s20, 1
      %s250 = scalar_select %p249, %s20, 1
      %p251 = scmp.lt.s32.totalorder %s248, 1
      %s252 = scalar_select %p251, %s248, 1
      %s253 = smul.addr %s250, 2
      %s254 = sadd.s32 %s252, %s253
      %s255 = smul.addr %s254, 4
      %s256 = scalar_lea.vmem %s5, %s255
      %s257 = smul.u32 2, %s21
      %p258 = scmp.lt.s32.totalorder %s20, 1
      %s259 = scalar_select %p258, %s20, 1
      %p260 = scmp.lt.s32.totalorder %s257, 1
      %s261 = scalar_select %p260, %s257, 1
      %s262 = smul.addr %s259, 2
      %s263 = sadd.s32 %s261, %s262
      %s264 = smul.addr %s263, 4
      %s265 = scalar_lea.vmem %s0, %s264
      %s266 = smul.u32 2, %s21
      %p267 = scmp.lt.s32.totalorder %s20, 1
      %s268 = scalar_select %p267, %s20, 1
      %s269 = smul.addr %s268, 8
      %s270 = scalar_lea.vmem %s1, %s269
      %s271 = smul.u32 2, %s21
      %p272 = scmp.lt.s32.totalorder %s20, 1
      %s273 = scalar_select %p272, %s20, 1
      %p274 = scmp.lt.s32.totalorder %s271, 1
      %s275 = scalar_select %p274, %s271, 1
      %s276 = smul.addr %s273, 2
      %s277 = sadd.s32 %s275, %s276
      %s278 = smul.addr %s277, 4
      %s279 = scalar_lea.vmem %s5, %s278
      %s280 = smul.u32 2, %s21
      %s281 = smul.u32 %s21, 16
      %s282 = scalar_lea.vmem %s2, %s281
      %v283 = vld [vmem:[%s282] sm:$0xff]
      %v284 = vld [vmem:[%s282 + $0x8] sm:$0xff]
      %v285 = vld [vmem:[%s270] sm:$0xff]
      %vm286 = vcmask 64512
      %v288 = vsel %vm286, %v283, 0
      %v291 = vsel %vm286, %v284, 0
      %293 = vmatprep.subr.mxu0 0.0
      %294 = vmatpush1.msra.mxu0 %v285
      %295 = vmatprep.subr.mxu0 0.0
      %296 = vmatpush1.msra.mxu0 0.0
      %297 = vmatprep.subr.mxu0 0.0
      %298 = vmatpush1.msra.mxu0 0.0
      %299 = vmatprep.subr.mxu0 0.0
      %300 = vmatpush1.msra.mxu0 0.0
      %301 = vmatprep.subr.mxu0 0.0
      %302 = vmatpush1.msra.mxu0 0.0
      %303 = vmatprep.subr.mxu0 0.0
      %304 = vmatpush1.msra.mxu0 0.0
      %305 = vmatprep.subr.mxu0 0.0
      %306 = vmatpush1.msra.mxu0 0.0
      %307 = vmatprep.subr.mxu0 0.0
      %308 = vmatpush1.msra.mxu0 0.0
      %309 = vmatprep.subr.mxu0 0.0
      %310 = vmatpush1.msra.mxu0 0.0
      %311 = vmatprep.subr.mxu0 0.0
      %312 = vmatpush1.msra.mxu0 0.0
      %313 = vmatprep.subr.mxu0 0.0
      %314 = vmatpush1.msra.mxu0 0.0
      %315 = vmatprep.subr.mxu0 0.0
      %316 = vmatpush1.msra.mxu0 0.0
      %317 = vmatprep.subr.mxu0 0.0
      %318 = vmatpush1.msra.mxu0 0.0
      %319 = vmatprep.subr.mxu0 0.0
      %320 = vmatpush1.msra.mxu0 0.0
      %321 = vmatprep.subr.mxu0 0.0
      %322 = vmatpush1.msra.mxu0 0.0
      %323 = vmatprep.subr.mxu0 0.0
      %324 = vmatpush1.msra.mxu0 0.0
      %325 = vmatprep.subr.mxu0 0.0
      %326 = vmatpush1.msra.mxu0 0.0
      %327 = vmatprep.subr.mxu0 0.0
      %328 = vmatpush1.msra.mxu0 0.0
      %329 = vmatprep.subr.mxu0 0.0
      %330 = vmatpush1.msra.mxu0 0.0
      %331 = vmatprep.subr.mxu0 0.0
      %332 = vmatpush1.msra.mxu0 0.0
      %333 = vmatprep.subr.mxu0 0.0
      %334 = vmatpush1.msra.mxu0 0.0
      %335 = vmatprep.subr.mxu0 0.0
      %336 = vmatpush1.msra.mxu0 0.0
      %337 = vmatprep.subr.mxu0 0.0
      %338 = vmatpush1.msra.mxu0 0.0
      %339 = vmatprep.subr.mxu0 0.0
      %340 = vmatpush1.msra.mxu0 0.0
      %341 = vmatprep.subr.mxu0 0.0
      %342 = vmatpush1.msra.mxu0 0.0
      %343 = vmatprep.subr.mxu0 0.0
      %344 = vmatpush1.msra.mxu0 0.0
      %345 = vmatprep.subr.mxu0 0.0
      %346 = vmatpush1.msra.mxu0 0.0
      %347 = vmatprep.subr.mxu0 0.0
      %348 = vmatpush1.msra.mxu0 0.0
      %349 = vmatprep.subr.mxu0 0.0
      %350 = vmatpush1.msra.mxu0 0.0
      %351 = vmatprep.subr.mxu0 0.0
      %352 = vmatpush1.msra.mxu0 0.0
      %353 = vmatprep.subr.mxu0 0.0
      %354 = vmatpush1.msra.mxu0 0.0
      %355 = vmatprep.subr.mxu0 0.0
      %356 = vmatpush1.msra.mxu0 0.0
      %357 = vmatprep.mubr.f32.mxu0 0.0
      %358 = vmatmul.mubr.f32.gmra.mrb[0].mxu0 %v288
      %v359 = vpop.f32.mrb[0].mxu0
      %v360 = vadd.f32 0.0, %v359
      %v361 = vpop.f32.mrb[0].mxu0
      %362 = vmatprep.mubr.f32.mxu0 0.0
      %363 = vmatmul.mubr.f32.gmra.mrb[0].mxu0 %v291
      %v364 = vpop.f32.mrb[0].mxu0
      %v365 = vadd.f32 0.0, %v364
      %v366 = vpop.f32.mrb[0].mxu0
      %367 = vdwg.mxu0
      %v368 = vld [vmem:[%s3] sm:$0xff]
      %v369 = vld [vmem:[%s3 + $0x8] sm:$0xff]
      %v371 = vsel %vm286, %v360, 0
      %v374 = vsel %vm286, %v365, 0
      %376 = vmatprep.subr.mxu0 %v369
      %377 = vmatpush1.msra.mxu0 %v368
      %378 = vmatprep.subr.mxu0 0.0
      %379 = vmatpush1.msra.mxu0 0.0
      %380 = vmatprep.subr.mxu0 0.0
      %381 = vmatpush1.msra.mxu0 0.0
      %382 = vmatprep.subr.mxu0 0.0
      %383 = vmatpush1.msra.mxu0 0.0
      %384 = vmatprep.subr.mxu0 0.0
      %385 = vmatpush1.msra.mxu0 0.0
      %386 = vmatprep.subr.mxu0 0.0
      %387 = vmatpush1.msra.mxu0 0.0
      %388 = vmatprep.subr.mxu0 0.0
      %389 = vmatpush1.msra.mxu0 0.0
      %390 = vmatprep.subr.mxu0 0.0
      %391 = vmatpush1.msra.mxu0 0.0
      %392 = vmatprep.subr.mxu0 0.0
      %393 = vmatpush1.msra.mxu0 0.0
      %394 = vmatprep.subr.mxu0 0.0
      %395 = vmatpush1.msra.mxu0 0.0
      %396 = vmatprep.subr.mxu0 0.0
      %397 = vmatpush1.msra.mxu0 0.0
      %398 = vmatprep.subr.mxu0 0.0
      %399 = vmatpush1.msra.mxu0 0.0
      %400 = vmatprep.subr.mxu0 0.0
      %401 = vmatpush1.msra.mxu0 0.0
      %402 = vmatprep.subr.mxu0 0.0
      %403 = vmatpush1.msra.mxu0 0.0
      %404 = vmatprep.subr.mxu0 0.0
      %405 = vmatpush1.msra.mxu0 0.0
      %406 = vmatprep.subr.mxu0 0.0
      %407 = vmatpush1.msra.mxu0 0.0
      %408 = vmatprep.subr.mxu0 0.0
      %409 = vmatpush1.msra.mxu0 0.0
      %410 = vmatprep.subr.mxu0 0.0
      %411 = vmatpush1.msra.mxu0 0.0
      %412 = vmatprep.subr.mxu0 0.0
      %413 = vmatpush1.msra.mxu0 0.0
      %414 = vmatprep.subr.mxu0 0.0
      %415 = vmatpush1.msra.mxu0 0.0
      %416 = vmatprep.subr.mxu0 0.0
      %417 = vmatpush1.msra.mxu0 0.0
      %418 = vmatprep.subr.mxu0 0.0
      %419 = vmatpush1.msra.mxu0 0.0
      %420 = vmatprep.subr.mxu0 0.0
      %421 = vmatpush1.msra.mxu0 0.0
      %422 = vmatprep.subr.mxu0 0.0
      %423 = vmatpush1.msra.mxu0 0.0
      %424 = vmatprep.subr.mxu0 0.0
      %425 = vmatpush1.msra.mxu0 0.0
      %426 = vmatprep.subr.mxu0 0.0
      %427 = vmatpush1.msra.mxu0 0.0
      %428 = vmatprep.subr.mxu0 0.0
      %429 = vmatpush1.msra.mxu0 0.0
      %430 = vmatprep.subr.mxu0 0.0
      %431 = vmatpush1.msra.mxu0 0.0
      %432 = vmatprep.subr.mxu0 0.0
      %433 = vmatpush1.msra.mxu0 0.0
      %434 = vmatprep.subr.mxu0 0.0
      %435 = vmatpush1.msra.mxu0 0.0
      %436 = vmatprep.subr.mxu0 0.0
      %437 = vmatpush1.msra.mxu0 0.0
      %438 = vmatprep.subr.mxu0 0.0
      %439 = vmatpush1.msra.mxu0 0.0
      %440 = vmatprep.mubr.f32.mxu0 0.0
      %441 = vmatmul.mubr.f32.gmra.mrb[0].mxu0 %v371
      %v442 = vpop.f32.mrb[0].mxu0
      %v443 = vadd.f32 0.0, %v442
      %v444 = vpop.f32.mrb[0].mxu0
      %v445 = vadd.f32 0.0, %v444
      %446 = vmatprep.mubr.f32.mxu0 0.0
      %447 = vmatmul.mubr.f32.gmra.mrb[0].mxu0 %v374
      %v448 = vpop.f32.mrb[0].mxu0
      %v449 = vadd.f32 0.0, %v448
      %v450 = vpop.f32.mrb[0].mxu0
      %v451 = vadd.f32 0.0, %v450
      %452 = vdwg.mxu0
      %v453 = vld [vmem:[%s4] sm:$0xff]
      %v454 = vld [vmem:[%s4 + $0x8] sm:$0xff]
      %v455 = vld [vmem:[%s4 + $0x10] sm:$0xff]
      %v456 = vld [vmem:[%s4 + $0x18] sm:$0xff]
      %v457 = vmul.f32 %v443, %v453
      %v458 = vmul.f32 %v445, %v454
      %v459 = vmul.f32 %v449, %v455
      %v460 = vmul.f32 %v451, %v456
      %v461 = vadd.f32 %v457, %v459
      %v462 = vrot.slane %v461, 4
      %v463 = vadd.f32 %v461, %v462
      %v464 = vrot.slane %v463, 2
      %v465 = vadd.f32 %v463, %v464
      %v466 = vrot.slane %v465, 1
      %v467 = vadd.f32 %v465, %v466
      %v468 = vadd.f32 %v458, %v460
      %v469 = vrot.slane %v468, 4
      %v470 = vadd.f32 %v468, %v469
      %v471 = vrot.slane %v470, 2
      %v472 = vadd.f32 %v470, %v471
      %v473 = vrot.slane %v472, 1
      %v474 = vadd.f32 %v472, %v473
      %v475 = vld [vmem:[%s265] sm:$0xff]
      %v478 = vcombine.low %v467, %v474
      %v480 = vmul.f32 %v475, %v478
      %481 = vst [vmem:[%s279] sm:$0xff] %v480
      %s482 = smul.u32 2, %s21
      %p483 = scmp.lt.s32.totalorder %s20, 1
      %s484 = scalar_select %p483, %s20, 1
      %p485 = scmp.lt.s32.totalorder %s482, 1
      %s486 = scalar_select %p485, %s482, 1
      %s487 = smul.addr %s484, 2
      %s488 = sadd.s32 %s486, %s487
      %s489 = smul.addr %s488, 4
      %s490 = scalar_lea.vmem %s5, %s489
      // Predicated region
      $region41: #{csa2d_forward.5} parent=39 // pred_check
        %p491 = pneg %p165
      $region42: #{csa2d_forward.5} parent=39 // pred_check_branch
        %493 = sbr.rel (%p491) target = $region44
      $region43: #{csa2d_forward.5} parent=39 // pred_region
        %s494 = smul.u32 2, %s21
      $region44: #{csa2d_forward.5} parent=39 // pred_fallthru
        _
    $region40: #{csa2d_forward.5} parent=5 // pred_fallthru
      _
    %p495 = scmp.le.s32.totalorder 2, %s11
    // Predicated region
    $region45: #{csa2d_forward.5} parent=5 // pred_check
      %p496 = pneg %p495
    $region46: #{csa2d_forward.5} parent=5 // pred_check_branch
      %498 = sbr.rel (%p496) target = $region48
    $region47: #{csa2d_forward.5} parent=5 // pred_region
      %s499 = ssub.s32 %s11, 2
      // Predicated region
      $region49: #{csa2d_forward.5} parent=47 // pred_check
        %p500 = pneg %p171
      $region50: #{csa2d_forward.5} parent=47 // pred_check_branch
        %502 = sbr.rel (%p500) target = $region52
      $region51: #{csa2d_forward.5} parent=47 // pred_region
        %s503 = smul.u32 2, %s23
        %p504 = scmp.lt.s32.totalorder %s22, 1
        %s505 = scalar_select %p504, %s22, 1
        %p506 = scmp.lt.s32.totalorder %s503, 1
        %s507 = scalar_select %p506, %s503, 1
        %s508 = smul.addr %s505, 2
        %s509 = sadd.s32 %s507, %s508
        %s510 = smul.addr %s509, 4
        %s511 = scalar_lea.vmem %s5, %s510
      $region52: #{csa2d_forward.5} parent=47 // pred_fallthru
        _
    $region48: #{csa2d_forward.5} parent=5 // pred_fallthru
      _
  $region6: #{csa2d_forward.5} parent=0 // loop_footer
    %s15 = sadd.s32 1, %s11
  $region7: #{csa2d_forward.5} parent=0 // loop_footer_branch
    %10 = sbr.rel target = $region3
  $region8: #{csa2d_forward.5} parent=0 // loop_exit
    _

</llo_original>
